<compile_context>
chip_gen: v6e
topology: v6e:2x2x1
jax: 0.10.0
libtpu: 0.0.40
codegen_flags: <defaults>
</compile_context>

<pallas_src>
import functools

import numpy as np
import jax
import jax.numpy as jnp
from jax.experimental import pallas as pl
from jax.experimental.pallas import tpu as pltpu


def _round_up(n, m):
    return ((n + m - 1) // m) * m


def _dcn_kernel(idx_ref, emb_ref, cw_ref, cb_ref, *rest,
                tb, num_fields, embed_dim, vocab_pad, num_cross, num_mlp):
    # rest = [mlp_w0, mlp_b0, ..., cd_w_ref, out_ref, x0_scratch]
    mlp_refs = rest[:2 * num_mlp]
    cd_w_ref = rest[2 * num_mlp]
    out_ref = rest[2 * num_mlp + 1]
    x0_scr = rest[2 * num_mlp + 2]

    # ---- 1. Embedding gather: per-field one-hot matmul on the MXU -----------
    emb = emb_ref[...]                                       # (V_pad, D) f32
    idx = idx_ref[...]                                       # (TB, F) int32
    iota_v = jax.lax.broadcasted_iota(jnp.int32, (tb, vocab_pad), 1)
    for f in range(num_fields):
        onehot = (idx[:, f:f + 1] == iota_v).astype(emb.dtype)   # (TB, V_pad)
        rows = jnp.dot(onehot, emb, preferred_element_type=jnp.float32)  # (TB, D)
        x0_scr[:, f * embed_dim:(f + 1) * embed_dim] = rows
    # TODO(synk): for production vocab sizes keep the table in HBM
    # (memory_space=pl.ANY) and double-buffer row DMAs with make_async_copy;
    # the resident-VMEM one-hot path is used here because the demo table is tiny.

    # ---- 2. Cross network: x = x0 * (x . w_l) + b_l + x ---------------------
    # x0 stays resident in VMEM and is re-read per layer to bound vreg pressure.
    x = x0_scr[...]                                          # (TB, E) f32
    for l in range(num_cross):
        w_l = cw_ref[l:l + 1, :]                             # (1, E)
        b_l = cb_ref[l:l + 1, :]                             # (1, E)
        xw = jnp.sum(x * w_l, axis=-1, keepdims=True)        # (TB, 1)  XLU reduce
        x = x0_scr[...] * xw + b_l + x

    # ---- 3. MLP: Linear (eval-BN folded into W', b') -> ReLU ----------------
    h = x
    for i in range(num_mlp):
        w = mlp_refs[2 * i][...]                             # (in_pad, out_pad)
        b = mlp_refs[2 * i + 1][...]                         # (1, out_pad) f32
        h = jnp.dot(h.astype(w.dtype), w,
                    preferred_element_type=jnp.float32) + b
        h = jnp.maximum(h, 0.0)
    # TODO(synk): training-mode BatchNorm statistics and Dropout masks are not
    # implemented; this is the eval/inference forward.

    # ---- 4. cd_linear -> lane-dense (1, TB) output row ----------------------
    out_ref[...] = jax.lax.dot_general(
        cd_w_ref[...], h,                                    # (1,H) x (TB,H) -> (1,TB)
        dimension_numbers=(((1,), (1,)), ((), ())),
        preferred_element_type=jnp.float32)


def dcn_forward(x_idx, emb, offsets, cross_w, cross_b, mlp_params, cd_w,
                *, tile_b=128, bn_eps=1e-5, mxu_dtype=jnp.float32):
    """Fused DCN forward.

    x_idx:      (B, F) int32 raw per-field categorical ids.
    emb:        (V, D) f32 embedding table (V = sum(field_dims)).
    offsets:    (F,)   int32 field offsets.
    cross_w:    (L, E) f32 rows of Linear(E, 1, bias=False) weights (E = F*D).
    cross_b:    (L, E) f32 cross biases.
    mlp_params: list of (W (in,out), b (out,), bn (4,out) = [gamma, beta, mean, var]).
    cd_w:       (1, H) f32 final projection weights.
    Returns (B,) f32 logits.
    """
    B, F = x_idx.shape
    V, D = emb.shape
    E = F * D
    L = cross_w.shape[0]
    num_mlp = len(mlp_params)
    assert B % tile_b == 0, "demo wrapper requires B % tile_b == 0"

    idx = (x_idx + offsets[None, :]).astype(jnp.int32)

    # Pad the vocab (sublane) dimension of the table to a multiple of 8.
    V_pad = _round_up(V, 8)
    emb_p = jnp.zeros((V_pad, D), jnp.float32).at[:V].set(emb)

    # Fold eval-mode BatchNorm into the Linear and zero-pad widths to 128 lanes.
    folded = []
    in_dim, in_pad = E, E
    for (w, bvec, bn) in mlp_params:
        gamma, beta, mean, var = bn[0], bn[1], bn[2], bn[3]
        scale = gamma * jax.lax.rsqrt(var + bn_eps)
        w_f = w * scale[None, :]
        b_f = (bvec - mean) * scale + beta
        out_dim = w.shape[1]
        out_pad = _round_up(out_dim, 128)
        w_p = jnp.zeros((in_pad, out_pad), jnp.float32).at[:in_dim, :out_dim].set(w_f)
        b_p = jnp.zeros((1, out_pad), jnp.float32).at[0, :out_dim].set(b_f)
        folded.append((w_p.astype(mxu_dtype), b_p))
        in_dim, in_pad = out_dim, out_pad

    H = cd_w.shape[1]
    cd_p = jnp.zeros((1, in_pad), jnp.float32).at[0, :H].set(cd_w[0])

    const = lambda b: (0, 0)
    operands = [idx, emb_p, cross_w, cross_b]
    in_specs = [
        pl.BlockSpec((tile_b, F), lambda b: (b, 0)),   # per-tile indices (VMEM)
        pl.BlockSpec((V_pad, D), const),               # resident table
        pl.BlockSpec(cross_w.shape, const),
        pl.BlockSpec(cross_b.shape, const),
    ]
    for (w_p, b_p) in folded:
        operands += [w_p, b_p]
        in_specs += [pl.BlockSpec(w_p.shape, const), pl.BlockSpec(b_p.shape, const)]
    operands.append(cd_p)
    in_specs.append(pl.BlockSpec(cd_p.shape, const))

    kernel = functools.partial(
        _dcn_kernel, tb=tile_b, num_fields=F, embed_dim=D, vocab_pad=V_pad,
        num_cross=L, num_mlp=num_mlp)

    # Explicit VMEM budget (important on v7x: 64 MiB physical, 32 MiB scoped default).
    blk_bytes = sum(int(np.prod(o.shape)) * o.dtype.itemsize for o in operands)
    scratch_bytes = tile_b * E * 4
    vmem_limit = int(min(2 * (blk_bytes + tile_b * 4) + scratch_bytes + (4 << 20),
                         64 << 20))

    out = pl.pallas_call(
        kernel,
        out_shape=jax.ShapeDtypeStruct((1, B), jnp.float32),
        grid_spec=pltpu.PrefetchScalarGridSpec(
            num_scalar_prefetch=0,
            grid=(B // tile_b,),
            in_specs=in_specs,
            out_specs=pl.BlockSpec((1, tile_b), lambda b: (0, b)),  # lane-dense out
            scratch_shapes=[pltpu.VMEM((tile_b, E), jnp.float32)],
        ),
        compiler_params=pltpu.CompilerParams(
            dimension_semantics=("parallel",),
            vmem_limit_bytes=vmem_limit),
    )(*operands)
    return out[0]


def dcn_reference(x_idx, emb, offsets, cross_w, cross_b, mlp_params, cd_w,
                  bn_eps=1e-5):
    """Pure-JAX reference mirroring the PyTorch eval forward (unfolded BN)."""
    idx = x_idx + offsets[None, :]
    B = x_idx.shape[0]
    x = emb[idx].reshape(B, -1)
    x0 = x
    for l in range(cross_w.shape[0]):
        xw = jnp.sum(x * cross_w[l][None, :], axis=-1, keepdims=True)
        x = x0 * xw + cross_b[l][None, :] + x
    h = x
    for (w, bvec, bn) in mlp_params:
        h = h @ w + bvec[None, :]
        gamma, beta, mean, var = bn
        h = (h - mean) * gamma / jnp.sqrt(var + bn_eps) + beta
        h = jnp.maximum(h, 0.0)
    return jnp.sum(h * cd_w, axis=-1)


if __name__ == "__main__":
    # Small deterministic configuration.
    field_dims = np.array([3, 4, 5, 6])        # F = 4 fields
    embed_dim = 32                             # E = F*D = 128 (lane-dense)
    num_cross = 3
    mlp_dims = (64,)                           # single hidden layer (matches cd_linear)
    batch = 256
    tile_b = 128                               # grid = (2,) -> feeds both v7x TCs

    F = len(field_dims)
    V = int(field_dims.sum())
    E = F * embed_dim
    offsets = jnp.asarray(
        np.array((0, *np.cumsum(field_dims)[:-1]), dtype=np.int32))

    key = jax.random.PRNGKey(0)
    keys = jax.random.split(key, 16)

    # Xavier-uniform embedding table.
    bound = float(np.sqrt(6.0 / (V + embed_dim)))
    emb = jax.random.uniform(keys[0], (V, embed_dim), jnp.float32, -bound, bound)

    cross_w = jax.random.normal(keys[1], (num_cross, E), jnp.float32) * 0.1
    cross_b = jax.random.normal(keys[2], (num_cross, E), jnp.float32) * 0.1

    mlp_params = []
    in_dim = E
    kidx = 3
    for hdim in mlp_dims:
        w = jax.random.normal(keys[kidx], (in_dim, hdim), jnp.float32) \
            * float(1.0 / np.sqrt(in_dim)); kidx += 1
        bvec = jax.random.normal(keys[kidx], (hdim,), jnp.float32) * 0.1; kidx += 1
        gamma = 1.0 + 0.1 * jax.random.normal(keys[kidx], (hdim,), jnp.float32); kidx += 1
        beta = 0.1 * jax.random.normal(keys[kidx], (hdim,), jnp.float32); kidx += 1
        mean = 0.1 * jax.random.normal(keys[kidx], (hdim,), jnp.float32); kidx += 1
        var = jnp.abs(1.0 + 0.1 * jax.random.normal(keys[kidx], (hdim,), jnp.float32)); kidx += 1
        mlp_params.append((w, bvec, jnp.stack([gamma, beta, mean, var], axis=0)))
        in_dim = hdim

    cd_w = jax.random.normal(keys[kidx], (1, mlp_dims[0]), jnp.float32) * 0.1

    # Per-field categorical ids in [0, field_dims[f]).
    x_cols = [jax.random.randint(k, (batch,), 0, int(field_dims[f]), dtype=jnp.int32)
              for f, k in enumerate(jax.random.split(keys[15], F))]
    x_idx = jnp.stack(x_cols, axis=1)          # (B, F) int32

    out = dcn_forward(x_idx, emb, offsets, cross_w, cross_b, mlp_params, cd_w,
                      tile_b=tile_b)
    out = jax.block_until_ready(out)

    ref = dcn_reference(x_idx, emb, offsets, cross_w, cross_b, mlp_params, cd_w)
    assert out.shape == (batch,), out.shape
    np.testing.assert_allclose(np.asarray(out), np.asarray(ref),
                               atol=5e-4, rtol=5e-4)
    print("KERNEL_OK")
</pallas_src>

<mosaic_0001>
module attributes {stable_mosaic.version = 11 : i64} {
  func.func @_dcn_kernel(%arg0: i32, %arg1: memref<128x4xi32, #tpu.memory_space<vmem>>, %arg2: memref<24x32xf32, #tpu.memory_space<vmem>>, %arg3: memref<3x128xf32, #tpu.memory_space<vmem>>, %arg4: memref<3x128xf32, #tpu.memory_space<vmem>>, %arg5: memref<128x128xf32, #tpu.memory_space<vmem>>, %arg6: memref<1x128xf32, #tpu.memory_space<vmem>>, %arg7: memref<1x128xf32, #tpu.memory_space<vmem>>, %arg8: memref<1x128xf32, #tpu.memory_space<vmem>>, %arg9: memref<128x128xf32, #tpu.memory_space<vmem>>) attributes {dimension_semantics = [#tpu.dimension_semantics<parallel>], iteration_bounds = array<i64: 2>, scalar_prefetch = 0 : i64, scratch_operands = 1 : i64, tpu.core_type = #tpu.core_type<tc>, window_params = [{transform_indices = @transform_0, window_bounds = array<i64: 128, 4>}, {pipeline_mode = #tpu.pipeline_mode<synchronous>, transform_indices = @transform_1, window_bounds = array<i64: 24, 32>}, {pipeline_mode = #tpu.pipeline_mode<synchronous>, transform_indices = @transform_2, window_bounds = array<i64: 3, 128>}, {pipeline_mode = #tpu.pipeline_mode<synchronous>, transform_indices = @transform_3, window_bounds = array<i64: 3, 128>}, {pipeline_mode = #tpu.pipeline_mode<synchronous>, transform_indices = @transform_4, window_bounds = array<i64: 128, 128>}, {pipeline_mode = #tpu.pipeline_mode<synchronous>, transform_indices = @transform_5, window_bounds = array<i64: 1, 128>}, {pipeline_mode = #tpu.pipeline_mode<synchronous>, transform_indices = @transform_6, window_bounds = array<i64: 1, 128>}, {transform_indices = @transform_7, window_bounds = array<i64: 1, 128>}]} {
    %c0 = arith.constant 0 : index
    %c0_0 = arith.constant 0 : index
    %0 = vector.load %arg2[%c0, %c0_0] : memref<24x32xf32, #tpu.memory_space<vmem>>, vector<24x32xf32>
    %c0_1 = arith.constant 0 : index
    %c0_2 = arith.constant 0 : index
    %1 = vector.load %arg1[%c0_1, %c0_2] : memref<128x4xi32, #tpu.memory_space<vmem>>, vector<128x4xi32>
    %2 = tpu.iota {dimensions = array<i32: 1>} : vector<128x24xi32>
    %3 = vector.extract_strided_slice %1 {offsets = [0, 0], sizes = [128, 1], strides = [1, 1]} : vector<128x4xi32> to vector<128x1xi32>
    %4 = vector.broadcast %3 : vector<128x1xi32> to vector<128x24xi32>
    %5 = arith.cmpi eq, %4, %2 : vector<128x24xi32>
    %6 = arith.extui %5 : vector<128x24xi1> to vector<128x24xi32>
    %7 = arith.sitofp %6 : vector<128x24xi32> to vector<128x24xf32>
    %cst = arith.constant dense<0.000000e+00> : vector<128x32xf32>
    %8 = tpu.matmul %7, %0, %cst {dimension_numbers = #tpu.dot_dimension_numbers<[1], [0], [0], [1], [0, 0, 1, 1], [], []>} : vector<128x24xf32>, vector<24x32xf32>, vector<128x32xf32> -> vector<128x32xf32>
    %c0_3 = arith.constant 0 : index
    %c0_4 = arith.constant 0 : index
    %9 = vector.load %arg9[%c0_3, %c0_4] : memref<128x128xf32, #tpu.memory_space<vmem>>, vector<128x32xf32>
    tpu.vector_store %arg9[%c0_3, %c0_4], %8 {strides = array<i32>} : memref<128x128xf32, #tpu.memory_space<vmem>>, vector<128x32xf32>,
    %10 = vector.extract_strided_slice %1 {offsets = [0, 1], sizes = [128, 1], strides = [1, 1]} : vector<128x4xi32> to vector<128x1xi32>
    %11 = vector.broadcast %10 : vector<128x1xi32> to vector<128x24xi32>
    %12 = arith.cmpi eq, %11, %2 : vector<128x24xi32>
    %13 = arith.extui %12 : vector<128x24xi1> to vector<128x24xi32>
    %14 = arith.sitofp %13 : vector<128x24xi32> to vector<128x24xf32>
    %cst_5 = arith.constant dense<0.000000e+00> : vector<128x32xf32>
    %15 = tpu.matmul %14, %0, %cst_5 {dimension_numbers = #tpu.dot_dimension_numbers<[1], [0], [0], [1], [0, 0, 1, 1], [], []>} : vector<128x24xf32>, vector<24x32xf32>, vector<128x32xf32> -> vector<128x32xf32>
    %c0_6 = arith.constant 0 : index
    %c32 = arith.constant 32 : index
    %16 = vector.load %arg9[%c0_6, %c32] : memref<128x128xf32, #tpu.memory_space<vmem>>, vector<128x32xf32>
    tpu.vector_store %arg9[%c0_6, %c32], %15 {strides = array<i32>} : memref<128x128xf32, #tpu.memory_space<vmem>>, vector<128x32xf32>,
    %17 = vector.extract_strided_slice %1 {offsets = [0, 2], sizes = [128, 1], strides = [1, 1]} : vector<128x4xi32> to vector<128x1xi32>
    %18 = vector.broadcast %17 : vector<128x1xi32> to vector<128x24xi32>
    %19 = arith.cmpi eq, %18, %2 : vector<128x24xi32>
    %20 = arith.extui %19 : vector<128x24xi1> to vector<128x24xi32>
    %21 = arith.sitofp %20 : vector<128x24xi32> to vector<128x24xf32>
    %cst_7 = arith.constant dense<0.000000e+00> : vector<128x32xf32>
    %22 = tpu.matmul %21, %0, %cst_7 {dimension_numbers = #tpu.dot_dimension_numbers<[1], [0], [0], [1], [0, 0, 1, 1], [], []>} : vector<128x24xf32>, vector<24x32xf32>, vector<128x32xf32> -> vector<128x32xf32>
    %c0_8 = arith.constant 0 : index
    %c64 = arith.constant 64 : index
    %23 = vector.load %arg9[%c0_8, %c64] : memref<128x128xf32, #tpu.memory_space<vmem>>, vector<128x32xf32>
    tpu.vector_store %arg9[%c0_8, %c64], %22 {strides = array<i32>} : memref<128x128xf32, #tpu.memory_space<vmem>>, vector<128x32xf32>,
    %24 = vector.extract_strided_slice %1 {offsets = [0, 3], sizes = [128, 1], strides = [1, 1]} : vector<128x4xi32> to vector<128x1xi32>
    %25 = vector.broadcast %24 : vector<128x1xi32> to vector<128x24xi32>
    %26 = arith.cmpi eq, %25, %2 : vector<128x24xi32>
    %27 = arith.extui %26 : vector<128x24xi1> to vector<128x24xi32>
    %28 = arith.sitofp %27 : vector<128x24xi32> to vector<128x24xf32>
    %cst_9 = arith.constant dense<0.000000e+00> : vector<128x32xf32>
    %29 = tpu.matmul %28, %0, %cst_9 {dimension_numbers = #tpu.dot_dimension_numbers<[1], [0], [0], [1], [0, 0, 1, 1], [], []>} : vector<128x24xf32>, vector<24x32xf32>, vector<128x32xf32> -> vector<128x32xf32>
    %c0_10 = arith.constant 0 : index
    %c96 = arith.constant 96 : index
    %30 = vector.load %arg9[%c0_10, %c96] : memref<128x128xf32, #tpu.memory_space<vmem>>, vector<128x32xf32>
    tpu.vector_store %arg9[%c0_10, %c96], %29 {strides = array<i32>} : memref<128x128xf32, #tpu.memory_space<vmem>>, vector<128x32xf32>,
    %c0_11 = arith.constant 0 : index
    %c0_12 = arith.constant 0 : index
    %31 = vector.load %arg9[%c0_11, %c0_12] : memref<128x128xf32, #tpu.memory_space<vmem>>, vector<128x128xf32>
    %c0_13 = arith.constant 0 : index
    %c0_14 = arith.constant 0 : index
    %32 = vector.load %arg3[%c0_13, %c0_14] : memref<3x128xf32, #tpu.memory_space<vmem>>, vector<1x128xf32>
    %c0_15 = arith.constant 0 : index
    %c0_16 = arith.constant 0 : index
    %33 = vector.load %arg4[%c0_15, %c0_16] : memref<3x128xf32, #tpu.memory_space<vmem>>, vector<1x128xf32>
    %34 = vector.broadcast %32 : vector<1x128xf32> to vector<128x128xf32>
    %35 = arith.mulf %31, %34 : vector<128x128xf32>
    %cst_17 = arith.constant dense<0.000000e+00> : vector<128xf32>
    %36 = vector.multi_reduction <add>, %35, %cst_17 [1] : vector<128x128xf32> to vector<128xf32>
    %37 = vector.shape_cast %36 : vector<128xf32> to vector<128x1xf32>
    %c0_18 = arith.constant 0 : index
    %c0_19 = arith.constant 0 : index
    %38 = vector.load %arg9[%c0_18, %c0_19] : memref<128x128xf32, #tpu.memory_space<vmem>>, vector<128x128xf32>
    %39 = vector.broadcast %37 : vector<128x1xf32> to vector<128x128xf32>
    %40 = arith.mulf %38, %39 : vector<128x128xf32>
    %41 = vector.broadcast %33 : vector<1x128xf32> to vector<128x128xf32>
    %42 = arith.addf %40, %41 : vector<128x128xf32>
    %43 = arith.addf %42, %31 : vector<128x128xf32>
    %c1 = arith.constant 1 : index
    %c0_20 = arith.constant 0 : index
    %44 = vector.load %arg3[%c1, %c0_20] : memref<3x128xf32, #tpu.memory_space<vmem>>, vector<1x128xf32>
    %c1_21 = arith.constant 1 : index
    %c0_22 = arith.constant 0 : index
    %45 = vector.load %arg4[%c1_21, %c0_22] : memref<3x128xf32, #tpu.memory_space<vmem>>, vector<1x128xf32>
    %46 = vector.broadcast %44 : vector<1x128xf32> to vector<128x128xf32>
    %47 = arith.mulf %43, %46 : vector<128x128xf32>
    %cst_23 = arith.constant dense<0.000000e+00> : vector<128xf32>
    %48 = vector.multi_reduction <add>, %47, %cst_23 [1] : vector<128x128xf32> to vector<128xf32>
    %49 = vector.shape_cast %48 : vector<128xf32> to vector<128x1xf32>
    %c0_24 = arith.constant 0 : index
    %c0_25 = arith.constant 0 : index
    %50 = vector.load %arg9[%c0_24, %c0_25] : memref<128x128xf32, #tpu.memory_space<vmem>>, vector<128x128xf32>
    %51 = vector.broadcast %49 : vector<128x1xf32> to vector<128x128xf32>
    %52 = arith.mulf %50, %51 : vector<128x128xf32>
    %53 = vector.broadcast %45 : vector<1x128xf32> to vector<128x128xf32>
    %54 = arith.addf %52, %53 : vector<128x128xf32>
    %55 = arith.addf %54, %43 : vector<128x128xf32>
    %c2 = arith.constant 2 : index
    %c0_26 = arith.constant 0 : index
    %56 = vector.load %arg3[%c2, %c0_26] : memref<3x128xf32, #tpu.memory_space<vmem>>, vector<1x128xf32>
    %c2_27 = arith.constant 2 : index
    %c0_28 = arith.constant 0 : index
    %57 = vector.load %arg4[%c2_27, %c0_28] : memref<3x128xf32, #tpu.memory_space<vmem>>, vector<1x128xf32>
    %58 = vector.broadcast %56 : vector<1x128xf32> to vector<128x128xf32>
    %59 = arith.mulf %55, %58 : vector<128x128xf32>
    %cst_29 = arith.constant dense<0.000000e+00> : vector<128xf32>
    %60 = vector.multi_reduction <add>, %59, %cst_29 [1] : vector<128x128xf32> to vector<128xf32>
    %61 = vector.shape_cast %60 : vector<128xf32> to vector<128x1xf32>
    %c0_30 = arith.constant 0 : index
    %c0_31 = arith.constant 0 : index
    %62 = vector.load %arg9[%c0_30, %c0_31] : memref<128x128xf32, #tpu.memory_space<vmem>>, vector<128x128xf32>
    %63 = vector.broadcast %61 : vector<128x1xf32> to vector<128x128xf32>
    %64 = arith.mulf %62, %63 : vector<128x128xf32>
    %65 = vector.broadcast %57 : vector<1x128xf32> to vector<128x128xf32>
    %66 = arith.addf %64, %65 : vector<128x128xf32>
    %67 = arith.addf %66, %55 : vector<128x128xf32>
    %c0_32 = arith.constant 0 : index
    %c0_33 = arith.constant 0 : index
    %68 = vector.load %arg5[%c0_32, %c0_33] : memref<128x128xf32, #tpu.memory_space<vmem>>, vector<128x128xf32>
    %c0_34 = arith.constant 0 : index
    %c0_35 = arith.constant 0 : index
    %69 = vector.load %arg6[%c0_34, %c0_35] : memref<1x128xf32, #tpu.memory_space<vmem>>, vector<1x128xf32>
    %cst_36 = arith.constant dense<0.000000e+00> : vector<128x128xf32>
    %70 = tpu.matmul %67, %68, %cst_36 {dimension_numbers = #tpu.dot_dimension_numbers<[1], [0], [0], [1], [0, 0, 1, 1], [], []>} : vector<128x128xf32>, vector<128x128xf32>, vector<128x128xf32> -> vector<128x128xf32>
    %71 = vector.broadcast %69 : vector<1x128xf32> to vector<128x128xf32>
    %72 = arith.addf %70, %71 : vector<128x128xf32>
    %cst_37 = arith.constant 0.000000e+00 : f32
    %73 = vector.broadcast %cst_37 : f32 to vector<128x128xf32>
    %74 = arith.maximumf %72, %73 : vector<128x128xf32>
    %c0_38 = arith.constant 0 : index
    %c0_39 = arith.constant 0 : index
    %75 = vector.load %arg7[%c0_38, %c0_39] : memref<1x128xf32, #tpu.memory_space<vmem>>, vector<1x128xf32>
    %cst_40 = arith.constant dense<0.000000e+00> : vector<1x128xf32>
    %76 = tpu.matmul %75, %74, %cst_40 {dimension_numbers = #tpu.dot_dimension_numbers<[1], [1], [0], [0], [0, 0, 1, 0], [], []>} : vector<1x128xf32>, vector<128x128xf32>, vector<1x128xf32> -> vector<1x128xf32>
    %c0_41 = arith.constant 0 : index
    %c0_42 = arith.constant 0 : index
    %77 = vector.load %arg8[%c0_41, %c0_42] : memref<1x128xf32, #tpu.memory_space<vmem>>, vector<1x128xf32>
    tpu.vector_store %arg8[%c0_41, %c0_42], %76 {strides = array<i32>} : memref<1x128xf32, #tpu.memory_space<vmem>>, vector<1x128xf32>,
    return
  }
  func.func @transform_0(%arg0: i32) -> (i32, i32) {
    %c0_i32 = arith.constant 0 : i32
    %c0_i32_0 = arith.constant 0 : i32
    return %arg0, %c0_i32 : i32, i32
  }
  func.func @transform_1(%arg0: i32) -> (i32, i32) {
    %c0_i32 = arith.constant 0 : i32
    %c0_i32_0 = arith.constant 0 : i32
    %c0_i32_1 = arith.constant 0 : i32
    return %c0_i32, %c0_i32_0 : i32, i32
  }
  func.func @transform_2(%arg0: i32) -> (i32, i32) {
    %c0_i32 = arith.constant 0 : i32
    %c0_i32_0 = arith.constant 0 : i32
    %c0_i32_1 = arith.constant 0 : i32
    return %c0_i32, %c0_i32_0 : i32, i32
  }
  func.func @transform_3(%arg0: i32) -> (i32, i32) {
    %c0_i32 = arith.constant 0 : i32
    %c0_i32_0 = arith.constant 0 : i32
    %c0_i32_1 = arith.constant 0 : i32
    return %c0_i32, %c0_i32_0 : i32, i32
  }
  func.func @transform_4(%arg0: i32) -> (i32, i32) {
    %c0_i32 = arith.constant 0 : i32
    %c0_i32_0 = arith.constant 0 : i32
    %c0_i32_1 = arith.constant 0 : i32
    return %c0_i32, %c0_i32_0 : i32, i32
  }
  func.func @transform_5(%arg0: i32) -> (i32, i32) {
    %c0_i32 = arith.constant 0 : i32
    %c0_i32_0 = arith.constant 0 : i32
    %c0_i32_1 = arith.constant 0 : i32
    return %c0_i32, %c0_i32_0 : i32, i32
  }
  func.func @transform_6(%arg0: i32) -> (i32, i32) {
    %c0_i32 = arith.constant 0 : i32
    %c0_i32_0 = arith.constant 0 : i32
    %c0_i32_1 = arith.constant 0 : i32
    return %c0_i32, %c0_i32_0 : i32, i32
  }
  func.func @transform_7(%arg0: i32) -> (i32, i32) {
    %c0_i32 = arith.constant 0 : i32
    %c0_i32_0 = arith.constant 0 : i32
    return %c0_i32, %arg0 : i32, i32
  }
}

</mosaic_0001>

<llo_original>
// kernel: tpu_custom_call.1
$region0: #{tpu_custom_call.1}
  #allocation0 [shape = 'u32[]', space=smem, size = 0x4, offset = 0x4, fixed_abs, tag = 'smem constant byte address 0x4 - core index']
  #allocation1 [shape = 'u32[144,128]{1,0:T(1,128)}', space=vmem, size = 0x12000, scoped, tag = 'internal scratch']
  #allocation2 [shape = 'f32[128,128]{1,0:T(8,128)}', space=vmem, size = 0x10000, scoped, tag = 'scratch operand']
  %s0 = inlined_call_operand.vmem [shape: s32[256,4], index: 0, kind: input, shape index: {}]
  %s1 = inlined_call_operand.vmem [shape: f32[24,32], index: 1, kind: input, shape index: {}]
  %s2 = inlined_call_operand.vmem [shape: f32[3,128], index: 2, kind: input, shape index: {}]
  %s3 = inlined_call_operand.vmem [shape: f32[3,128], index: 3, kind: input, shape index: {}]
  %s4 = inlined_call_operand.vmem [shape: f32[128,128], index: 4, kind: input, shape index: {}]
  %s5 = inlined_call_operand.vmem [shape: f32[1,128], index: 5, kind: input, shape index: {}]
  %s6 = inlined_call_operand.vmem [shape: f32[1,128], index: 6, kind: input, shape index: {}]
  %s7 = inlined_call_operand.hbm [shape: f32[1,256], index: 7, kind: output, shape index: {}]
  %s8 = sld [smem:[#allocation0]]
  $region61: #{tpu_custom_call.1} parent=0
    _
  %s10 = ssub.s32 1, %s8
  %s11 = scalar_select 0, %s10, %s8
  $region1: #{tpu_custom_call.1} parent=0
    #allocation3 [shape = 'u8[1024]{0}', space=vmem, size = 0x400, scoped, tag = 'output window, operand 0']
    #allocation4 [shape = 's32[2]{0}', space=sflag, size = 0x8, scoped, tag = 'scoped memory for tpu_custom_call.1']
    %12 = vsyncpa [#allocation4], 0
    %s13 = scalar_lea.sflag [#allocation4], 1
    %14 = vsyncpa %s13, 0
    loop: start=0, step=1, limit=4
    $region2: #{tpu_custom_call.1} parent=1 // loop_pre_header
      _
    $region3: #{tpu_custom_call.1} parent=1 // loop_header
      %s16 = sphi 0, %s20
      %p17 = scmp.ge.s32.totalorder %s16, 4
      %s26 = sphi 0, %s28
      %s29 = sphi 0, %s26
      %s30 = sphi 0, %s29
      %s46 = sphi 0, %s30
      %s50 = sphi 0, %s50
      %s52 = sphi 0, %s50
      %s53 = sphi 0, %s52
      %s67 = sphi 0, %s53
      %s71 = sphi 0, %s71
      %s73 = sphi 0, %s71
      %s74 = sphi 0, %s73
      %s88 = sphi 0, %s74
      %s92 = sphi 0, %s92
      %s94 = sphi 0, %s92
      %s95 = sphi 0, %s94
      %s109 = sphi 0, %s95
      %s113 = sphi 0, %s113
      %s115 = sphi 0, %s113
      %s116 = sphi 0, %s115
      %s130 = sphi 0, %s116
      %s134 = sphi 0, %s134
      %s136 = sphi 0, %s134
      %s137 = sphi 0, %s136
      %s151 = sphi 0, %s137
      %s155 = sphi 0, %s155
      %s157 = sphi 0, %s155
      %s158 = sphi 0, %s157
      %s172 = sphi 0, %s158
      %s178 = sphi 0, %s180
      %s181 = sphi 0, %s178
      %s182 = sphi 0, %s181
      %s198 = sphi 0, %s182
    $region4: #{tpu_custom_call.1} parent=1 // loop_header_branch
      %19 = sbr.rel (%p17) target = $region8
    $region5: #{tpu_custom_call.1} parent=1 // loop_body
      %s21 = ssub.s32 %s16, 1
      %s22 = ssub.s32 %s16, 2
      %s23 = sadd.s32 %s16, 1
      %s24 = ssub.s32 %s16, %s23
      %p25 = scmp.eq.s32.totalorder %s24, 0
      %s27 = sadd.s32 %s26, 1
      %s28 = scalar_select %p25, %s26, %s27
      %p31 = pneg %p25
      %p32 = scmp.eq.s32.totalorder %s16, 1
      %p33 = por %p31, %p32
      %p34 = scmp.ne.s32.totalorder %s26, %s29
      %p35 = scmp.eq.s32.totalorder %s16, 0
      %p36 = por %p34, %p35
      %p37 = scmp.ne.s32.totalorder %s26, %s29
      %p38 = scmp.eq.s32.totalorder %s21, 1
      %p39 = por %p37, %p38
      %p40 = scmp.ne.s32.totalorder %s29, %s30
      %p41 = scmp.eq.s32.totalorder %s21, 0
      %p42 = por %p40, %p41
      %p43 = scmp.ne.s32.totalorder %s29, %s30
      %p44 = scmp.eq.s32.totalorder %s22, 1
      %p45 = por %p43, %p44
      %p47 = scmp.ne.s32.totalorder %s30, %s46
      %p48 = scmp.eq.s32.totalorder %s22, 0
      %p49 = por %p47, %p48
      %s51 = sadd.s32 %s50, 1
      %p54 = scmp.eq.s32.totalorder %s16, 1
      %p55 = scmp.ne.s32.totalorder %s50, %s52
      %p56 = scmp.eq.s32.totalorder %s16, 0
      %p57 = por %p55, %p56
      %p58 = scmp.ne.s32.totalorder %s50, %s52
      %p59 = scmp.eq.s32.totalorder %s21, 1
      %p60 = por %p58, %p59
      %p61 = scmp.ne.s32.totalorder %s52, %s53
      %p62 = scmp.eq.s32.totalorder %s21, 0
      %p63 = por %p61, %p62
      %p64 = scmp.ne.s32.totalorder %s52, %s53
      %p65 = scmp.eq.s32.totalorder %s22, 1
      %p66 = por %p64, %p65
      %p68 = scmp.ne.s32.totalorder %s53, %s67
      %p69 = scmp.eq.s32.totalorder %s22, 0
      %p70 = por %p68, %p69
      %s72 = sadd.s32 %s71, 1
      %p75 = scmp.eq.s32.totalorder %s16, 1
      %p76 = scmp.ne.s32.totalorder %s71, %s73
      %p77 = scmp.eq.s32.totalorder %s16, 0
      %p78 = por %p76, %p77
      %p79 = scmp.ne.s32.totalorder %s71, %s73
      %p80 = scmp.eq.s32.totalorder %s21, 1
      %p81 = por %p79, %p80
      %p82 = scmp.ne.s32.totalorder %s73, %s74
      %p83 = scmp.eq.s32.totalorder %s21, 0
      %p84 = por %p82, %p83
      %p85 = scmp.ne.s32.totalorder %s73, %s74
      %p86 = scmp.eq.s32.totalorder %s22, 1
      %p87 = por %p85, %p86
      %p89 = scmp.ne.s32.totalorder %s74, %s88
      %p90 = scmp.eq.s32.totalorder %s22, 0
      %p91 = por %p89, %p90
      %s93 = sadd.s32 %s92, 1
      %p96 = scmp.eq.s32.totalorder %s16, 1
      %p97 = scmp.ne.s32.totalorder %s92, %s94
      %p98 = scmp.eq.s32.totalorder %s16, 0
      %p99 = por %p97, %p98
      %p100 = scmp.ne.s32.totalorder %s92, %s94
      %p101 = scmp.eq.s32.totalorder %s21, 1
      %p102 = por %p100, %p101
      %p103 = scmp.ne.s32.totalorder %s94, %s95
      %p104 = scmp.eq.s32.totalorder %s21, 0
      %p105 = por %p103, %p104
      %p106 = scmp.ne.s32.totalorder %s94, %s95
      %p107 = scmp.eq.s32.totalorder %s22, 1
      %p108 = por %p106, %p107
      %p110 = scmp.ne.s32.totalorder %s95, %s109
      %p111 = scmp.eq.s32.totalorder %s22, 0
      %p112 = por %p110, %p111
      %s114 = sadd.s32 %s113, 1
      %p117 = scmp.eq.s32.totalorder %s16, 1
      %p118 = scmp.ne.s32.totalorder %s113, %s115
      %p119 = scmp.eq.s32.totalorder %s16, 0
      %p120 = por %p118, %p119
      %p121 = scmp.ne.s32.totalorder %s113, %s115
      %p122 = scmp.eq.s32.totalorder %s21, 1
      %p123 = por %p121, %p122
      %p124 = scmp.ne.s32.totalorder %s115, %s116
      %p125 = scmp.eq.s32.totalorder %s21, 0
      %p126 = por %p124, %p125
      %p127 = scmp.ne.s32.totalorder %s115, %s116
      %p128 = scmp.eq.s32.totalorder %s22, 1
      %p129 = por %p127, %p128
      %p131 = scmp.ne.s32.totalorder %s116, %s130
      %p132 = scmp.eq.s32.totalorder %s22, 0
      %p133 = por %p131, %p132
      %s135 = sadd.s32 %s134, 1
      %p138 = scmp.eq.s32.totalorder %s16, 1
      %p139 = scmp.ne.s32.totalorder %s134, %s136
      %p140 = scmp.eq.s32.totalorder %s16, 0
      %p141 = por %p139, %p140
      %p142 = scmp.ne.s32.totalorder %s134, %s136
      %p143 = scmp.eq.s32.totalorder %s21, 1
      %p144 = por %p142, %p143
      %p145 = scmp.ne.s32.totalorder %s136, %s137
      %p146 = scmp.eq.s32.totalorder %s21, 0
      %p147 = por %p145, %p146
      %p148 = scmp.ne.s32.totalorder %s136, %s137
      %p149 = scmp.eq.s32.totalorder %s22, 1
      %p150 = por %p148, %p149
      %p152 = scmp.ne.s32.totalorder %s137, %s151
      %p153 = scmp.eq.s32.totalorder %s22, 0
      %p154 = por %p152, %p153
      %s156 = sadd.s32 %s155, 1
      %p159 = scmp.eq.s32.totalorder %s16, 1
      %p160 = scmp.ne.s32.totalorder %s155, %s157
      %p161 = scmp.eq.s32.totalorder %s16, 0
      %p162 = por %p160, %p161
      %p163 = scmp.ne.s32.totalorder %s155, %s157
      %p164 = scmp.eq.s32.totalorder %s21, 1
      %p165 = por %p163, %p164
      %p166 = scmp.ne.s32.totalorder %s157, %s158
      %p167 = scmp.eq.s32.totalorder %s21, 0
      %p168 = por %p166, %p167
      %p169 = scmp.ne.s32.totalorder %s157, %s158
      %p170 = scmp.eq.s32.totalorder %s22, 1
      %p171 = por %p169, %p170
      %p173 = scmp.ne.s32.totalorder %s158, %s172
      %p174 = scmp.eq.s32.totalorder %s22, 0
      %p175 = por %p173, %p174
      %s176 = ssub.s32 %s16, %s23
      %p177 = scmp.eq.s32.totalorder %s176, 0
      %s179 = sadd.s32 %s178, 1
      %s180 = scalar_select %p177, %s178, %s179
      %p183 = pneg %p177
      %p184 = scmp.eq.s32.totalorder %s16, 1
      %p185 = por %p183, %p184
      %p186 = scmp.ne.s32.totalorder %s178, %s181
      %p187 = scmp.eq.s32.totalorder %s16, 0
      %p188 = por %p186, %p187
      %p189 = scmp.ne.s32.totalorder %s178, %s181
      %p190 = scmp.eq.s32.totalorder %s21, 1
      %p191 = por %p189, %p190
      %p192 = scmp.ne.s32.totalorder %s181, %s182
      %p193 = scmp.eq.s32.totalorder %s21, 0
      %p194 = por %p192, %p193
      %p195 = scmp.ne.s32.totalorder %s181, %s182
      %p196 = scmp.eq.s32.totalorder %s22, 1
      %p197 = por %p195, %p196
      %p199 = scmp.ne.s32.totalorder %s182, %s198
      %p200 = scmp.eq.s32.totalorder %s22, 0
      %p201 = por %p199, %p200
      %p202 = scmp.le.s32.totalorder 1, %s16
      %p203 = scmp.lt.s32.totalorder %s16, 3
      %p204 = pnand %p202, %p203
      %p205 = pneg %p204
      // Predicated region
      $region9: #{tpu_custom_call.1} parent=5 // pred_check
        _
      $region10: #{tpu_custom_call.1} parent=5 // pred_check_branch
        %207 = sbr.rel (%p204) target = $region12
      $region11: #{tpu_custom_call.1} parent=5 // pred_region
        %s208 = ssub.s32 %s16, 1
        // Predicated region
        $region13: #{tpu_custom_call.1} parent=11 // pred_check
          %p209 = pneg %p63
        $region14: #{tpu_custom_call.1} parent=11 // pred_check_branch
          %211 = sbr.rel (%p209) target = $region16
        $region15: #{tpu_custom_call.1} parent=11 // pred_region
          _
        $region16: #{tpu_custom_call.1} parent=11 // pred_fallthru
          _
        // Predicated region
        $region17: #{tpu_custom_call.1} parent=11 // pred_check
          %p212 = pneg %p84
        $region18: #{tpu_custom_call.1} parent=11 // pred_check_branch
          %214 = sbr.rel (%p212) target = $region20
        $region19: #{tpu_custom_call.1} parent=11 // pred_region
          _
        $region20: #{tpu_custom_call.1} parent=11 // pred_fallthru
          _
        // Predicated region
        $region21: #{tpu_custom_call.1} parent=11 // pred_check
          %p215 = pneg %p105
        $region22: #{tpu_custom_call.1} parent=11 // pred_check_branch
          %217 = sbr.rel (%p215) target = $region24
        $region23: #{tpu_custom_call.1} parent=11 // pred_region
          _
        $region24: #{tpu_custom_call.1} parent=11 // pred_fallthru
          _
        // Predicated region
        $region25: #{tpu_custom_call.1} parent=11 // pred_check
          %p218 = pneg %p126
        $region26: #{tpu_custom_call.1} parent=11 // pred_check_branch
          %220 = sbr.rel (%p218) target = $region28
        $region27: #{tpu_custom_call.1} parent=11 // pred_region
          _
        $region28: #{tpu_custom_call.1} parent=11 // pred_fallthru
          _
        // Predicated region
        $region29: #{tpu_custom_call.1} parent=11 // pred_check
          %p221 = pneg %p147
        $region30: #{tpu_custom_call.1} parent=11 // pred_check_branch
          %223 = sbr.rel (%p221) target = $region32
        $region31: #{tpu_custom_call.1} parent=11 // pred_region
          _
        $region32: #{tpu_custom_call.1} parent=11 // pred_fallthru
          _
        // Predicated region
        $region33: #{tpu_custom_call.1} parent=11 // pred_check
          %p224 = pneg %p168
        $region34: #{tpu_custom_call.1} parent=11 // pred_check_branch
          %226 = sbr.rel (%p224) target = $region36
        $region35: #{tpu_custom_call.1} parent=11 // pred_region
          _
        $region36: #{tpu_custom_call.1} parent=11 // pred_fallthru
          _
      $region12: #{tpu_custom_call.1} parent=5 // pred_fallthru
        _
      %p227 = scmp.lt.s32.totalorder %s16, 2
      // Predicated region
      $region37: #{tpu_custom_call.1} parent=5 // pred_check
        %p228 = pneg %p227
      $region38: #{tpu_custom_call.1} parent=5 // pred_check_branch
        %230 = sbr.rel (%p228) target = $region40
      $region39: #{tpu_custom_call.1} parent=5 // pred_region
        // Predicated region
        $region41: #{tpu_custom_call.1} parent=39 // pred_check
          %p231 = pneg %p36
        $region42: #{tpu_custom_call.1} parent=39 // pred_check_branch
          %233 = sbr.rel (%p231) target = $region44
        $region43: #{tpu_custom_call.1} parent=39 // pred_region
          %s234 = smul.u32 16, %s16
          %p235 = scmp.lt.s32.totalorder %s234, 31
          %s236 = scalar_select %p235, %s234, 31
          %s237 = smul.addr %s236, 8
          %s238 = scalar_lea.vmem %s0, %s237
          %s239 = smul.u32 16, %s16
        $region44: #{tpu_custom_call.1} parent=39 // pred_fallthru
          _
      $region40: #{tpu_custom_call.1} parent=5 // pred_fallthru
        _
      %p240 = scmp.le.s32.totalorder 1, %s16
      %p241 = scmp.lt.s32.totalorder %s16, 3
      %p242 = pnand %p240, %p241
      %p243 = pneg %p242
      // Predicated region
      $region45: #{tpu_custom_call.1} parent=5 // pred_check
        _
      $region46: #{tpu_custom_call.1} parent=5 // pred_check_branch
        %245 = sbr.rel (%p242) target = $region48
      $region47: #{tpu_custom_call.1} parent=5 // pred_region
        %s246 = ssub.s32 %s16, 1
        %s247 = smul.u32 16, %s21
        %p248 = scmp.lt.s32.totalorder %s247, 31
        %s249 = scalar_select %p248, %s247, 31
        %s250 = smul.addr %s249, 8
        %s251 = scalar_lea.vmem %s0, %s250
        %p252 = pneg %p42
        %p253 = pneg %p39
        %p254 = pneg %p63
        %p255 = pneg %p60
        %p256 = pneg %p84
        %p257 = pneg %p81
        %p258 = pneg %p105
        %p259 = pneg %p102
        %p260 = pneg %p126
        %p261 = pneg %p123
        %p262 = pneg %p147
        %p263 = pneg %p144
        %p264 = pneg %p168
        %p265 = pneg %p165
        %p266 = pneg %p194
        %p267 = pneg %p191
        %s268 = sand.u32 %s181, 1
        %s269 = scalar_lea.sflag [#allocation4], %s268
        %s270 = sand.u32 %s181, 1
        %s271 = scalar_lea.vmem [#allocation3], %s270
        %s272 = smul.u32 16, %s21
        %p273 = scmp.lt.s32.totalorder %s272, 31
        %s274 = scalar_select %p273, %s272, 31
        %s275 = smul.addr %s274, 8
        %s276 = scalar_lea.vmem %s0, %s275
        %s277 = smul.u32 16, %s21
        %v278 = vld [vmem:[%s1] sm:$0xff]
        %v279 = vld [vmem:[%s1 + $0x8] sm:$0xff]
        %v280 = vld [vmem:[%s1 + $0x10] sm:$0xff]
        %v281 = vld [vmem:[%s276] sm:$0xff]
        %v282 = vld [vmem:[%s276 + $0x8] sm:$0xff]
        %v283 = vld [vmem:[%s276 + $0x10] sm:$0xff]
        %v284 = vld [vmem:[%s276 + $0x18] sm:$0xff]
        %v285 = vld [vmem:[%s276 + $0x20] sm:$0xff]
        %v286 = vld [vmem:[%s276 + $0x28] sm:$0xff]
        %v287 = vld [vmem:[%s276 + $0x30] sm:$0xff]
        %v288 = vld [vmem:[%s276 + $0x38] sm:$0xff]
        %v289 = vld [vmem:[%s276 + $0x40] sm:$0xff]
        %v290 = vld [vmem:[%s276 + $0x48] sm:$0xff]
        %v291 = vld [vmem:[%s276 + $0x50] sm:$0xff]
        %v292 = vld [vmem:[%s276 + $0x58] sm:$0xff]
        %v293 = vld [vmem:[%s276 + $0x60] sm:$0xff]
        %v294 = vld [vmem:[%s276 + $0x68] sm:$0xff]
        %v295 = vld [vmem:[%s276 + $0x70] sm:$0xff]
        %v296 = vld [vmem:[%s276 + $0x78] sm:$0xff]
        %v297 = vlaneseq
        %v298 = vand.u32 %v297, 127
        %299 = vset.pattern.permute.xlu0 0
        %300 = vperm.xlu0 %299, %v281
        %v301 = vpop.permute.xlu0 %300
        %302 = vset.pattern.permute.xlu0 0
        %303 = vperm.xlu0 %302, %v282
        %v304 = vpop.permute.xlu0 %303
        %305 = vset.pattern.permute.xlu0 0
        %306 = vperm.xlu0 %305, %v283
        %v307 = vpop.permute.xlu0 %306
        %308 = vset.pattern.permute.xlu0 0
        %309 = vperm.xlu0 %308, %v284
        %v310 = vpop.permute.xlu0 %309
        %311 = vset.pattern.permute.xlu0 0
        %312 = vperm.xlu0 %311, %v285
        %v313 = vpop.permute.xlu0 %312
        %314 = vset.pattern.permute.xlu0 0
        %315 = vperm.xlu0 %314, %v286
        %v316 = vpop.permute.xlu0 %315
        %317 = vset.pattern.permute.xlu0 0
        %318 = vperm.xlu0 %317, %v287
        %v319 = vpop.permute.xlu0 %318
        %320 = vset.pattern.permute.xlu0 0
        %321 = vperm.xlu0 %320, %v288
        %v322 = vpop.permute.xlu0 %321
        %323 = vset.pattern.permute.xlu0 0
        %324 = vperm.xlu0 %323, %v289
        %v325 = vpop.permute.xlu0 %324
        %326 = vset.pattern.permute.xlu0 0
        %327 = vperm.xlu0 %326, %v290
        %v328 = vpop.permute.xlu0 %327
        %329 = vset.pattern.permute.xlu0 0
        %330 = vperm.xlu0 %329, %v291
        %v331 = vpop.permute.xlu0 %330
        %332 = vset.pattern.permute.xlu0 0
        %333 = vperm.xlu0 %332, %v292
        %v334 = vpop.permute.xlu0 %333
        %335 = vset.pattern.permute.xlu0 0
        %336 = vperm.xlu0 %335, %v293
        %v337 = vpop.permute.xlu0 %336
        %338 = vset.pattern.permute.xlu0 0
        %339 = vperm.xlu0 %338, %v294
        %v340 = vpop.permute.xlu0 %339
        %341 = vset.pattern.permute.xlu0 0
        %342 = vperm.xlu0 %341, %v295
        %v343 = vpop.permute.xlu0 %342
        %344 = vset.pattern.permute.xlu0 0
        %345 = vperm.xlu0 %344, %v296
        %v346 = vpop.permute.xlu0 %345
        %vm347 = vcmp.eq.s32.totalorder %v301, %v298
        %vm348 = vcmp.eq.s32.totalorder %v304, %v298
        %vm349 = vcmp.eq.s32.totalorder %v307, %v298
        %vm350 = vcmp.eq.s32.totalorder %v310, %v298
        %vm351 = vcmp.eq.s32.totalorder %v313, %v298
        %vm352 = vcmp.eq.s32.totalorder %v316, %v298
        %vm353 = vcmp.eq.s32.totalorder %v319, %v298
        %vm354 = vcmp.eq.s32.totalorder %v322, %v298
        %vm355 = vcmp.eq.s32.totalorder %v325, %v298
        %vm356 = vcmp.eq.s32.totalorder %v328, %v298
        %vm357 = vcmp.eq.s32.totalorder %v331, %v298
        %vm358 = vcmp.eq.s32.totalorder %v334, %v298
        %vm359 = vcmp.eq.s32.totalorder %v337, %v298
        %vm360 = vcmp.eq.s32.totalorder %v340, %v298
        %vm361 = vcmp.eq.s32.totalorder %v343, %v298
        %vm362 = vcmp.eq.s32.totalorder %v346, %v298
        %v363 = vsel %vm347, 1, 0
        %v364 = vsel %vm348, 1, 0
        %v365 = vsel %vm349, 1, 0
        %v366 = vsel %vm350, 1, 0
        %v367 = vsel %vm351, 1, 0
        %v368 = vsel %vm352, 1, 0
        %v369 = vsel %vm353, 1, 0
        %v370 = vsel %vm354, 1, 0
        %v371 = vsel %vm355, 1, 0
        %v372 = vsel %vm356, 1, 0
        %v373 = vsel %vm357, 1, 0
        %v374 = vsel %vm358, 1, 0
        %v375 = vsel %vm359, 1, 0
        %v376 = vsel %vm360, 1, 0
        %v377 = vsel %vm361, 1, 0
        %v378 = vsel %vm362, 1, 0
        %v379 = vcvt.s32.f32 %v363
        %v380 = vcvt.s32.f32 %v364
        %v381 = vcvt.s32.f32 %v365
        %v382 = vcvt.s32.f32 %v366
        %v383 = vcvt.s32.f32 %v367
        %v384 = vcvt.s32.f32 %v368
        %v385 = vcvt.s32.f32 %v369
        %v386 = vcvt.s32.f32 %v370
        %v387 = vcvt.s32.f32 %v371
        %v388 = vcvt.s32.f32 %v372
        %v389 = vcvt.s32.f32 %v373
        %v390 = vcvt.s32.f32 %v374
        %v391 = vcvt.s32.f32 %v375
        %v392 = vcvt.s32.f32 %v376
        %v393 = vcvt.s32.f32 %v377
        %v394 = vcvt.s32.f32 %v378
        %vm395 = vcmask 195584
        %v397 = vsel %vm395, %v379, 0
        %v400 = vsel %vm395, %v380, 0
        %v403 = vsel %vm395, %v381, 0
        %v406 = vsel %vm395, %v382, 0
        %v409 = vsel %vm395, %v383, 0
        %v412 = vsel %vm395, %v384, 0
        %v415 = vsel %vm395, %v385, 0
        %v418 = vsel %vm395, %v386, 0
        %v421 = vsel %vm395, %v387, 0
        %v424 = vsel %vm395, %v388, 0
        %v427 = vsel %vm395, %v389, 0
        %v430 = vsel %vm395, %v390, 0
        %v433 = vsel %vm395, %v391, 0
        %v436 = vsel %vm395, %v392, 0
        %v439 = vsel %vm395, %v393, 0
        %v442 = vsel %vm395, %v394, 0
        %444 = vmatprep.subr.mxu0 0.0
        %445 = vmatpush1.msra.mxu0 0.0
        %446 = vmatprep.subr.mxu0 0.0
        %447 = vmatpush1.msra.mxu0 0.0
        %448 = vmatprep.subr.mxu0 0.0
        %449 = vmatpush1.msra.mxu0 0.0
        %450 = vmatprep.subr.mxu0 0.0
        %451 = vmatpush1.msra.mxu0 0.0
        %452 = vmatprep.subr.mxu0 0.0
        %453 = vmatpush1.msra.mxu0 0.0
        %454 = vmatprep.subr.mxu0 0.0
        %455 = vmatpush1.msra.mxu0 0.0
        %456 = vmatprep.subr.mxu0 0.0
        %457 = vmatpush1.msra.mxu0 0.0
        %458 = vmatprep.subr.mxu0 0.0
        %459 = vmatpush1.msra.mxu0 0.0
        %460 = vmatprep.subr.mxu0 0.0
        %461 = vmatpush1.msra.mxu0 0.0
        %462 = vmatprep.subr.mxu0 0.0
        %463 = vmatpush1.msra.mxu0 0.0
        %464 = vmatprep.subr.mxu0 0.0
        %465 = vmatpush1.msra.mxu0 0.0
        %466 = vmatprep.subr.mxu0 0.0
        %467 = vmatpush1.msra.mxu0 0.0
        %468 = vmatprep.subr.mxu0 0.0
        %469 = vmatpush1.msra.mxu0 0.0
        %470 = vmatprep.subr.mxu0 0.0
        %471 = vmatpush1.msra.mxu0 %v280
        %472 = vmatprep.subr.mxu0 0.0
        %473 = vmatpush1.msra.mxu0 %v279
        %474 = vmatprep.subr.mxu0 0.0
        %475 = vmatpush1.msra.mxu0 %v278
        %476 = vmatprep.subr.mxu0 0.0
        %477 = vmatpush2.msra.mxu0 0.0
        %478 = vmatprep.subr.mxu0 0.0
        %479 = vmatpush2.msra.mxu0 0.0
        %480 = vmatprep.subr.mxu0 0.0
        %481 = vmatpush2.msra.mxu0 0.0
        %482 = vmatprep.subr.mxu0 0.0
        %483 = vmatpush2.msra.mxu0 0.0
        %484 = vmatprep.subr.mxu0 0.0
        %485 = vmatpush2.msra.mxu0 0.0
        %486 = vmatprep.subr.mxu0 0.0
        %487 = vmatpush2.msra.mxu0 0.0
        %488 = vmatprep.subr.mxu0 0.0
        %489 = vmatpush2.msra.mxu0 0.0
        %490 = vmatprep.subr.mxu0 0.0
        %491 = vmatpush2.msra.mxu0 0.0
        %492 = vmatprep.subr.mxu0 0.0
        %493 = vmatpush2.msra.mxu0 0.0
        %494 = vmatprep.subr.mxu0 0.0
        %495 = vmatpush2.msra.mxu0 0.0
        %496 = vmatprep.subr.mxu0 0.0
        %497 = vmatpush2.msra.mxu0 0.0
        %498 = vmatprep.subr.mxu0 0.0
        %499 = vmatpush2.msra.mxu0 0.0
        %500 = vmatprep.subr.mxu0 0.0
        %501 = vmatpush2.msra.mxu0 0.0
        %502 = vmatprep.subr.mxu0 0.0
        %503 = vmatpush2.msra.mxu0 0.0
        %504 = vmatprep.subr.mxu0 0.0
        %505 = vmatpush2.msra.mxu0 0.0
        %506 = vmatprep.subr.mxu0 0.0
        %507 = vmatpush2.msra.mxu0 0.0
        %508 = vmatprep.mubr.f32.mxu0 0.0
        %509 = vmatmul.mubr.f32.gmra.mxu0 %v397
        %v510 = vpop.f32.mrf.mxu0
        %v511 = vadd.f32 0.0, %v510
        %v512 = vpop.f32.mrf.mxu0
        %513 = vmatprep.mubr.f32.mxu0 0.0
        %514 = vmatmul.mubr.f32.gmra.mxu0 %v400
        %v515 = vpop.f32.mrf.mxu0
        %v516 = vadd.f32 0.0, %v515
        %v517 = vpop.f32.mrf.mxu0
        %518 = vmatprep.mubr.f32.mxu0 0.0
        %519 = vmatmul.mubr.f32.gmra.mxu0 %v403
        %v520 = vpop.f32.mrf.mxu0
        %v521 = vadd.f32 0.0, %v520
        %v522 = vpop.f32.mrf.mxu0
        %523 = vmatprep.mubr.f32.mxu0 0.0
        %524 = vmatmul.mubr.f32.gmra.mxu0 %v406
        %v525 = vpop.f32.mrf.mxu0
        %v526 = vadd.f32 0.0, %v525
        %v527 = vpop.f32.mrf.mxu0
        %528 = vmatprep.mubr.f32.mxu0 0.0
        %529 = vmatmul.mubr.f32.gmra.mxu0 %v409
        %v530 = vpop.f32.mrf.mxu0
        %v531 = vadd.f32 0.0, %v530
        %v532 = vpop.f32.mrf.mxu0
        %533 = vmatprep.mubr.f32.mxu0 0.0
        %534 = vmatmul.mubr.f32.gmra.mxu0 %v412
        %v535 = vpop.f32.mrf.mxu0
        %v536 = vadd.f32 0.0, %v535
        %v537 = vpop.f32.mrf.mxu0
        %538 = vmatprep.mubr.f32.mxu0 0.0
        %539 = vmatmul.mubr.f32.gmra.mxu0 %v415
        %v540 = vpop.f32.mrf.mxu0
        %v541 = vadd.f32 0.0, %v540
        %v542 = vpop.f32.mrf.mxu0
        %543 = vmatprep.mubr.f32.mxu0 0.0
        %544 = vmatmul.mubr.f32.gmra.mxu0 %v418
        %v545 = vpop.f32.mrf.mxu0
        %v546 = vadd.f32 0.0, %v545
        %v547 = vpop.f32.mrf.mxu0
        %548 = vmatprep.mubr.f32.mxu0 0.0
        %549 = vmatmul.mubr.f32.gmra.mxu0 %v421
        %v550 = vpop.f32.mrf.mxu0
        %v551 = vadd.f32 0.0, %v550
        %v552 = vpop.f32.mrf.mxu0
        %553 = vmatprep.mubr.f32.mxu0 0.0
        %554 = vmatmul.mubr.f32.gmra.mxu0 %v424
        %v555 = vpop.f32.mrf.mxu0
        %v556 = vadd.f32 0.0, %v555
        %v557 = vpop.f32.mrf.mxu0
        %558 = vmatprep.mubr.f32.mxu0 0.0
        %559 = vmatmul.mubr.f32.gmra.mxu0 %v427
        %v560 = vpop.f32.mrf.mxu0
        %v561 = vadd.f32 0.0, %v560
        %v562 = vpop.f32.mrf.mxu0
        %563 = vmatprep.mubr.f32.mxu0 0.0
        %564 = vmatmul.mubr.f32.gmra.mxu0 %v430
        %v565 = vpop.f32.mrf.mxu0
        %v566 = vadd.f32 0.0, %v565
        %v567 = vpop.f32.mrf.mxu0
        %568 = vmatprep.mubr.f32.mxu0 0.0
        %569 = vmatmul.mubr.f32.gmra.mxu0 %v433
        %v570 = vpop.f32.mrf.mxu0
        %v571 = vadd.f32 0.0, %v570
        %v572 = vpop.f32.mrf.mxu0
        %573 = vmatprep.mubr.f32.mxu0 0.0
        %574 = vmatmul.mubr.f32.gmra.mxu0 %v436
        %v575 = vpop.f32.mrf.mxu0
        %v576 = vadd.f32 0.0, %v575
        %v577 = vpop.f32.mrf.mxu0
        %578 = vmatprep.mubr.f32.mxu0 0.0
        %579 = vmatmul.mubr.f32.gmra.mxu0 %v439
        %v580 = vpop.f32.mrf.mxu0
        %v581 = vadd.f32 0.0, %v580
        %v582 = vpop.f32.mrf.mxu0
        %583 = vmatprep.mubr.f32.mxu0 0.0
        %584 = vmatmul.mubr.f32.gmra.mxu0 %v442
        %v585 = vpop.f32.mrf.mxu0
        %v586 = vadd.f32 0.0, %v585
        %v587 = vpop.f32.mrf.mxu0
        %588 = vdwg.mxu0
        %vm589 = vcmask 261120
        %590 = vst.msk [vmem:[#allocation2] sm:$0xff] %vm589, %v511
        %591 = vst.msk [vmem:[#allocation2 + $0x8] sm:$0xff] %vm589, %v516
        %592 = vst.msk [vmem:[#allocation2 + $0x10] sm:$0xff] %vm589, %v521
        %593 = vst.msk [vmem:[#allocation2 + $0x18] sm:$0xff] %vm589, %v526
        %594 = vst.msk [vmem:[#allocation2 + $0x20] sm:$0xff] %vm589, %v531
        %595 = vst.msk [vmem:[#allocation2 + $0x28] sm:$0xff] %vm589, %v536
        %596 = vst.msk [vmem:[#allocation2 + $0x30] sm:$0xff] %vm589, %v541
        %597 = vst.msk [vmem:[#allocation2 + $0x38] sm:$0xff] %vm589, %v546
        %598 = vst.msk [vmem:[#allocation2 + $0x40] sm:$0xff] %vm589, %v551
        %599 = vst.msk [vmem:[#allocation2 + $0x48] sm:$0xff] %vm589, %v556
        %600 = vst.msk [vmem:[#allocation2 + $0x50] sm:$0xff] %vm589, %v561
        %601 = vst.msk [vmem:[#allocation2 + $0x58] sm:$0xff] %vm589, %v566
        %602 = vst.msk [vmem:[#allocation2 + $0x60] sm:$0xff] %vm589, %v571
        %603 = vst.msk [vmem:[#allocation2 + $0x68] sm:$0xff] %vm589, %v576
        %604 = vst.msk [vmem:[#allocation2 + $0x70] sm:$0xff] %vm589, %v581
        %605 = vst.msk [vmem:[#allocation2 + $0x78] sm:$0xff] %vm589, %v586
        %606 = vset.pattern.permute.xlu0 1
        %607 = vperm.xlu0 %606, %v281
        %v608 = vpop.permute.xlu0 %607
        %609 = vset.pattern.permute.xlu0 1
        %610 = vperm.xlu0 %609, %v282
        %v611 = vpop.permute.xlu0 %610
        %612 = vset.pattern.permute.xlu0 1
        %613 = vperm.xlu0 %612, %v283
        %v614 = vpop.permute.xlu0 %613
        %615 = vset.pattern.permute.xlu0 1
        %616 = vperm.xlu0 %615, %v284
        %v617 = vpop.permute.xlu0 %616
        %618 = vset.pattern.permute.xlu0 1
        %619 = vperm.xlu0 %618, %v285
        %v620 = vpop.permute.xlu0 %619
        %621 = vset.pattern.permute.xlu0 1
        %622 = vperm.xlu0 %621, %v286
        %v623 = vpop.permute.xlu0 %622
        %624 = vset.pattern.permute.xlu0 1
        %625 = vperm.xlu0 %624, %v287
        %v626 = vpop.permute.xlu0 %625
        %627 = vset.pattern.permute.xlu0 1
        %628 = vperm.xlu0 %627, %v288
        %v629 = vpop.permute.xlu0 %628
        %630 = vset.pattern.permute.xlu0 1
        %631 = vperm.xlu0 %630, %v289
        %v632 = vpop.permute.xlu0 %631
        %633 = vset.pattern.permute.xlu0 1
        %634 = vperm.xlu0 %633, %v290
        %v635 = vpop.permute.xlu0 %634
        %636 = vset.pattern.permute.xlu0 1
        %637 = vperm.xlu0 %636, %v291
        %v638 = vpop.permute.xlu0 %637
        %639 = vset.pattern.permute.xlu0 1
        %640 = vperm.xlu0 %639, %v292
        %v641 = vpop.permute.xlu0 %640
        %642 = vset.pattern.permute.xlu0 1
        %643 = vperm.xlu0 %642, %v293
        %v644 = vpop.permute.xlu0 %643
        %645 = vset.pattern.permute.xlu0 1
        %646 = vperm.xlu0 %645, %v294
        %v647 = vpop.permute.xlu0 %646
        %648 = vset.pattern.permute.xlu0 1
        %649 = vperm.xlu0 %648, %v295
        %v650 = vpop.permute.xlu0 %649
        %651 = vset.pattern.permute.xlu0 1
        %652 = vperm.xlu0 %651, %v296
        %v653 = vpop.permute.xlu0 %652
        %vm654 = vcmp.eq.s32.totalorder %v608, %v298
        %vm655 = vcmp.eq.s32.totalorder %v611, %v298
        %vm656 = vcmp.eq.s32.totalorder %v614, %v298
        %vm657 = vcmp.eq.s32.totalorder %v617, %v298
        %vm658 = vcmp.eq.s32.totalorder %v620, %v298
        %vm659 = vcmp.eq.s32.totalorder %v623, %v298
        %vm660 = vcmp.eq.s32.totalorder %v626, %v298
        %vm661 = vcmp.eq.s32.totalorder %v629, %v298
        %vm662 = vcmp.eq.s32.totalorder %v632, %v298
        %vm663 = vcmp.eq.s32.totalorder %v635, %v298
        %vm664 = vcmp.eq.s32.totalorder %v638, %v298
        %vm665 = vcmp.eq.s32.totalorder %v641, %v298
        %vm666 = vcmp.eq.s32.totalorder %v644, %v298
        %vm667 = vcmp.eq.s32.totalorder %v647, %v298
        %vm668 = vcmp.eq.s32.totalorder %v650, %v298
        %vm669 = vcmp.eq.s32.totalorder %v653, %v298
        %v670 = vsel %vm654, 1, 0
        %v671 = vsel %vm655, 1, 0
        %v672 = vsel %vm656, 1, 0
        %v673 = vsel %vm657, 1, 0
        %v674 = vsel %vm658, 1, 0
        %v675 = vsel %vm659, 1, 0
        %v676 = vsel %vm660, 1, 0
        %v677 = vsel %vm661, 1, 0
        %v678 = vsel %vm662, 1, 0
        %v679 = vsel %vm663, 1, 0
        %v680 = vsel %vm664, 1, 0
        %v681 = vsel %vm665, 1, 0
        %v682 = vsel %vm666, 1, 0
        %v683 = vsel %vm667, 1, 0
        %v684 = vsel %vm668, 1, 0
        %v685 = vsel %vm669, 1, 0
        %v686 = vcvt.s32.f32 %v670
        %v687 = vcvt.s32.f32 %v671
        %v688 = vcvt.s32.f32 %v672
        %v689 = vcvt.s32.f32 %v673
        %v690 = vcvt.s32.f32 %v674
        %v691 = vcvt.s32.f32 %v675
        %v692 = vcvt.s32.f32 %v676
        %v693 = vcvt.s32.f32 %v677
        %v694 = vcvt.s32.f32 %v678
        %v695 = vcvt.s32.f32 %v679
        %v696 = vcvt.s32.f32 %v680
        %v697 = vcvt.s32.f32 %v681
        %v698 = vcvt.s32.f32 %v682
        %v699 = vcvt.s32.f32 %v683
        %v700 = vcvt.s32.f32 %v684
        %v701 = vcvt.s32.f32 %v685
        %v703 = vsel %vm395, %v686, 0
        %v706 = vsel %vm395, %v687, 0
        %v709 = vsel %vm395, %v688, 0
        %v712 = vsel %vm395, %v689, 0
        %v715 = vsel %vm395, %v690, 0
        %v718 = vsel %vm395, %v691, 0
        %v721 = vsel %vm395, %v692, 0
        %v724 = vsel %vm395, %v693, 0
        %v727 = vsel %vm395, %v694, 0
        %v730 = vsel %vm395, %v695, 0
        %v733 = vsel %vm395, %v696, 0
        %v736 = vsel %vm395, %v697, 0
        %v739 = vsel %vm395, %v698, 0
        %v742 = vsel %vm395, %v699, 0
        %v745 = vsel %vm395, %v700, 0
        %v748 = vsel %vm395, %v701, 0
        %750 = vmatprep.subr.mxu0 0.0
        %751 = vmatpush1.msra.mxu0 0.0
        %752 = vmatprep.subr.mxu0 0.0
        %753 = vmatpush1.msra.mxu0 0.0
        %754 = vmatprep.subr.mxu0 0.0
        %755 = vmatpush1.msra.mxu0 0.0
        %756 = vmatprep.subr.mxu0 0.0
        %757 = vmatpush1.msra.mxu0 0.0
        %758 = vmatprep.subr.mxu0 0.0
        %759 = vmatpush1.msra.mxu0 0.0
        %760 = vmatprep.subr.mxu0 0.0
        %761 = vmatpush1.msra.mxu0 0.0
        %762 = vmatprep.subr.mxu0 0.0
        %763 = vmatpush1.msra.mxu0 0.0
        %764 = vmatprep.subr.mxu0 0.0
        %765 = vmatpush1.msra.mxu0 0.0
        %766 = vmatprep.subr.mxu0 0.0
        %767 = vmatpush1.msra.mxu0 0.0
        %768 = vmatprep.subr.mxu0 0.0
        %769 = vmatpush1.msra.mxu0 0.0
        %770 = vmatprep.subr.mxu0 0.0
        %771 = vmatpush1.msra.mxu0 0.0
        %772 = vmatprep.subr.mxu0 0.0
        %773 = vmatpush1.msra.mxu0 0.0
        %774 = vmatprep.subr.mxu0 0.0
        %775 = vmatpush1.msra.mxu0 0.0
        %776 = vmatprep.subr.mxu0 0.0
        %777 = vmatpush1.msra.mxu0 %v280
        %778 = vmatprep.subr.mxu0 0.0
        %779 = vmatpush1.msra.mxu0 %v279
        %780 = vmatprep.subr.mxu0 0.0
        %781 = vmatpush1.msra.mxu0 %v278
        %782 = vmatprep.subr.mxu0 0.0
        %783 = vmatpush2.msra.mxu0 0.0
        %784 = vmatprep.subr.mxu0 0.0
        %785 = vmatpush2.msra.mxu0 0.0
        %786 = vmatprep.subr.mxu0 0.0
        %787 = vmatpush2.msra.mxu0 0.0
        %788 = vmatprep.subr.mxu0 0.0
        %789 = vmatpush2.msra.mxu0 0.0
        %790 = vmatprep.subr.mxu0 0.0
        %791 = vmatpush2.msra.mxu0 0.0
        %792 = vmatprep.subr.mxu0 0.0
        %793 = vmatpush2.msra.mxu0 0.0
        %794 = vmatprep.subr.mxu0 0.0
        %795 = vmatpush2.msra.mxu0 0.0
        %796 = vmatprep.subr.mxu0 0.0
        %797 = vmatpush2.msra.mxu0 0.0
        %798 = vmatprep.subr.mxu0 0.0
        %799 = vmatpush2.msra.mxu0 0.0
        %800 = vmatprep.subr.mxu0 0.0
        %801 = vmatpush2.msra.mxu0 0.0
        %802 = vmatprep.subr.mxu0 0.0
        %803 = vmatpush2.msra.mxu0 0.0
        %804 = vmatprep.subr.mxu0 0.0
        %805 = vmatpush2.msra.mxu0 0.0
        %806 = vmatprep.subr.mxu0 0.0
        %807 = vmatpush2.msra.mxu0 0.0
        %808 = vmatprep.subr.mxu0 0.0
        %809 = vmatpush2.msra.mxu0 0.0
        %810 = vmatprep.subr.mxu0 0.0
        %811 = vmatpush2.msra.mxu0 0.0
        %812 = vmatprep.subr.mxu0 0.0
        %813 = vmatpush2.msra.mxu0 0.0
        %814 = vmatprep.mubr.f32.mxu0 0.0
        %815 = vmatmul.mubr.f32.gmra.mxu0 %v703
        %v816 = vpop.f32.mrf.mxu0
        %v817 = vadd.f32 0.0, %v816
        %v818 = vpop.f32.mrf.mxu0
        %819 = vmatprep.mubr.f32.mxu0 0.0
        %820 = vmatmul.mubr.f32.gmra.mxu0 %v706
        %v821 = vpop.f32.mrf.mxu0
        %v822 = vadd.f32 0.0, %v821
        %v823 = vpop.f32.mrf.mxu0
        %824 = vmatprep.mubr.f32.mxu0 0.0
        %825 = vmatmul.mubr.f32.gmra.mxu0 %v709
        %v826 = vpop.f32.mrf.mxu0
        %v827 = vadd.f32 0.0, %v826
        %v828 = vpop.f32.mrf.mxu0
        %829 = vmatprep.mubr.f32.mxu0 0.0
        %830 = vmatmul.mubr.f32.gmra.mxu0 %v712
        %v831 = vpop.f32.mrf.mxu0
        %v832 = vadd.f32 0.0, %v831
        %v833 = vpop.f32.mrf.mxu0
        %834 = vmatprep.mubr.f32.mxu0 0.0
        %835 = vmatmul.mubr.f32.gmra.mxu0 %v715
        %v836 = vpop.f32.mrf.mxu0
        %v837 = vadd.f32 0.0, %v836
        %v838 = vpop.f32.mrf.mxu0
        %839 = vmatprep.mubr.f32.mxu0 0.0
        %840 = vmatmul.mubr.f32.gmra.mxu0 %v718
        %v841 = vpop.f32.mrf.mxu0
        %v842 = vadd.f32 0.0, %v841
        %v843 = vpop.f32.mrf.mxu0
        %844 = vmatprep.mubr.f32.mxu0 0.0
        %845 = vmatmul.mubr.f32.gmra.mxu0 %v721
        %v846 = vpop.f32.mrf.mxu0
        %v847 = vadd.f32 0.0, %v846
        %v848 = vpop.f32.mrf.mxu0
        %849 = vmatprep.mubr.f32.mxu0 0.0
        %850 = vmatmul.mubr.f32.gmra.mxu0 %v724
        %v851 = vpop.f32.mrf.mxu0
        %v852 = vadd.f32 0.0, %v851
        %v853 = vpop.f32.mrf.mxu0
        %854 = vmatprep.mubr.f32.mxu0 0.0
        %855 = vmatmul.mubr.f32.gmra.mxu0 %v727
        %v856 = vpop.f32.mrf.mxu0
        %v857 = vadd.f32 0.0, %v856
        %v858 = vpop.f32.mrf.mxu0
        %859 = vmatprep.mubr.f32.mxu0 0.0
        %860 = vmatmul.mubr.f32.gmra.mxu0 %v730
        %v861 = vpop.f32.mrf.mxu0
        %v862 = vadd.f32 0.0, %v861
        %v863 = vpop.f32.mrf.mxu0
        %864 = vmatprep.mubr.f32.mxu0 0.0
        %865 = vmatmul.mubr.f32.gmra.mxu0 %v733
        %v866 = vpop.f32.mrf.mxu0
        %v867 = vadd.f32 0.0, %v866
        %v868 = vpop.f32.mrf.mxu0
        %869 = vmatprep.mubr.f32.mxu0 0.0
        %870 = vmatmul.mubr.f32.gmra.mxu0 %v736
        %v871 = vpop.f32.mrf.mxu0
        %v872 = vadd.f32 0.0, %v871
        %v873 = vpop.f32.mrf.mxu0
        %874 = vmatprep.mubr.f32.mxu0 0.0
        %875 = vmatmul.mubr.f32.gmra.mxu0 %v739
        %v876 = vpop.f32.mrf.mxu0
        %v877 = vadd.f32 0.0, %v876
        %v878 = vpop.f32.mrf.mxu0
        %879 = vmatprep.mubr.f32.mxu0 0.0
        %880 = vmatmul.mubr.f32.gmra.mxu0 %v742
        %v881 = vpop.f32.mrf.mxu0
        %v882 = vadd.f32 0.0, %v881
        %v883 = vpop.f32.mrf.mxu0
        %884 = vmatprep.mubr.f32.mxu0 0.0
        %885 = vmatmul.mubr.f32.gmra.mxu0 %v745
        %v886 = vpop.f32.mrf.mxu0
        %v887 = vadd.f32 0.0, %v886
        %v888 = vpop.f32.mrf.mxu0
        %889 = vmatprep.mubr.f32.mxu0 0.0
        %890 = vmatmul.mubr.f32.gmra.mxu0 %v748
        %v891 = vpop.f32.mrf.mxu0
        %v892 = vadd.f32 0.0, %v891
        %v893 = vpop.f32.mrf.mxu0
        %894 = vdwg.mxu0
        %911 = vrot.lane.b32.xlu0 %v817, 32
        %v912 = vpop.permute.xlu0 %911
        %913 = vrot.lane.b32.xlu0 %v822, 32
        %v914 = vpop.permute.xlu0 %913
        %915 = vrot.lane.b32.xlu0 %v827, 32
        %v916 = vpop.permute.xlu0 %915
        %917 = vrot.lane.b32.xlu0 %v832, 32
        %v918 = vpop.permute.xlu0 %917
        %919 = vrot.lane.b32.xlu0 %v837, 32
        %v920 = vpop.permute.xlu0 %919
        %921 = vrot.lane.b32.xlu0 %v842, 32
        %v922 = vpop.permute.xlu0 %921
        %923 = vrot.lane.b32.xlu0 %v847, 32
        %v924 = vpop.permute.xlu0 %923
        %925 = vrot.lane.b32.xlu0 %v852, 32
        %v926 = vpop.permute.xlu0 %925
        %927 = vrot.lane.b32.xlu0 %v857, 32
        %v928 = vpop.permute.xlu0 %927
        %929 = vrot.lane.b32.xlu0 %v862, 32
        %v930 = vpop.permute.xlu0 %929
        %931 = vrot.lane.b32.xlu0 %v867, 32
        %v932 = vpop.permute.xlu0 %931
        %933 = vrot.lane.b32.xlu0 %v872, 32
        %v934 = vpop.permute.xlu0 %933
        %935 = vrot.lane.b32.xlu0 %v877, 32
        %v936 = vpop.permute.xlu0 %935
        %937 = vrot.lane.b32.xlu0 %v882, 32
        %v938 = vpop.permute.xlu0 %937
        %939 = vrot.lane.b32.xlu0 %v887, 32
        %v940 = vpop.permute.xlu0 %939
        %941 = vrot.lane.b32.xlu0 %v892, 32
        %v942 = vpop.permute.xlu0 %941
        %vm959 = vcmask 523520
        %960 = vst.msk [vmem:[#allocation2] sm:$0xff] %vm959, %v912
        %961 = vst.msk [vmem:[#allocation2 + $0x8] sm:$0xff] %vm959, %v914
        %962 = vst.msk [vmem:[#allocation2 + $0x10] sm:$0xff] %vm959, %v916
        %963 = vst.msk [vmem:[#allocation2 + $0x18] sm:$0xff] %vm959, %v918
        %964 = vst.msk [vmem:[#allocation2 + $0x20] sm:$0xff] %vm959, %v920
        %965 = vst.msk [vmem:[#allocation2 + $0x28] sm:$0xff] %vm959, %v922
        %966 = vst.msk [vmem:[#allocation2 + $0x30] sm:$0xff] %vm959, %v924
        %967 = vst.msk [vmem:[#allocation2 + $0x38] sm:$0xff] %vm959, %v926
        %968 = vst.msk [vmem:[#allocation2 + $0x40] sm:$0xff] %vm959, %v928
        %969 = vst.msk [vmem:[#allocation2 + $0x48] sm:$0xff] %vm959, %v930
        %970 = vst.msk [vmem:[#allocation2 + $0x50] sm:$0xff] %vm959, %v932
        %971 = vst.msk [vmem:[#allocation2 + $0x58] sm:$0xff] %vm959, %v934
        %972 = vst.msk [vmem:[#allocation2 + $0x60] sm:$0xff] %vm959, %v936
        %973 = vst.msk [vmem:[#allocation2 + $0x68] sm:$0xff] %vm959, %v938
        %974 = vst.msk [vmem:[#allocation2 + $0x70] sm:$0xff] %vm959, %v940
        %975 = vst.msk [vmem:[#allocation2 + $0x78] sm:$0xff] %vm959, %v942
        %976 = vset.pattern.permute.xlu0 2
        %977 = vperm.xlu0 %976, %v281
        %v978 = vpop.permute.xlu0 %977
        %979 = vset.pattern.permute.xlu0 2
        %980 = vperm.xlu0 %979, %v282
        %v981 = vpop.permute.xlu0 %980
        %982 = vset.pattern.permute.xlu0 2
        %983 = vperm.xlu0 %982, %v283
        %v984 = vpop.permute.xlu0 %983
        %985 = vset.pattern.permute.xlu0 2
        %986 = vperm.xlu0 %985, %v284
        %v987 = vpop.permute.xlu0 %986
        %988 = vset.pattern.permute.xlu0 2
        %989 = vperm.xlu0 %988, %v285
        %v990 = vpop.permute.xlu0 %989
        %991 = vset.pattern.permute.xlu0 2
        %992 = vperm.xlu0 %991, %v286
        %v993 = vpop.permute.xlu0 %992
        %994 = vset.pattern.permute.xlu0 2
        %995 = vperm.xlu0 %994, %v287
        %v996 = vpop.permute.xlu0 %995
        %997 = vset.pattern.permute.xlu0 2
        %998 = vperm.xlu0 %997, %v288
        %v999 = vpop.permute.xlu0 %998
        %1000 = vset.pattern.permute.xlu0 2
        %1001 = vperm.xlu0 %1000, %v289
        %v1002 = vpop.permute.xlu0 %1001
        %1003 = vset.pattern.permute.xlu0 2
        %1004 = vperm.xlu0 %1003, %v290
        %v1005 = vpop.permute.xlu0 %1004
        %1006 = vset.pattern.permute.xlu0 2
        %1007 = vperm.xlu0 %1006, %v291
        %v1008 = vpop.permute.xlu0 %1007
        %1009 = vset.pattern.permute.xlu0 2
        %1010 = vperm.xlu0 %1009, %v292
        %v1011 = vpop.permute.xlu0 %1010
        %1012 = vset.pattern.permute.xlu0 2
        %1013 = vperm.xlu0 %1012, %v293
        %v1014 = vpop.permute.xlu0 %1013
        %1015 = vset.pattern.permute.xlu0 2
        %1016 = vperm.xlu0 %1015, %v294
        %v1017 = vpop.permute.xlu0 %1016
        %1018 = vset.pattern.permute.xlu0 2
        %1019 = vperm.xlu0 %1018, %v295
        %v1020 = vpop.permute.xlu0 %1019
        %1021 = vset.pattern.permute.xlu0 2
        %1022 = vperm.xlu0 %1021, %v296
        %v1023 = vpop.permute.xlu0 %1022
        %vm1024 = vcmp.eq.s32.totalorder %v978, %v298
        %vm1025 = vcmp.eq.s32.totalorder %v981, %v298
        %vm1026 = vcmp.eq.s32.totalorder %v984, %v298
        %vm1027 = vcmp.eq.s32.totalorder %v987, %v298
        %vm1028 = vcmp.eq.s32.totalorder %v990, %v298
        %vm1029 = vcmp.eq.s32.totalorder %v993, %v298
        %vm1030 = vcmp.eq.s32.totalorder %v996, %v298
        %vm1031 = vcmp.eq.s32.totalorder %v999, %v298
        %vm1032 = vcmp.eq.s32.totalorder %v1002, %v298
        %vm1033 = vcmp.eq.s32.totalorder %v1005, %v298
        %vm1034 = vcmp.eq.s32.totalorder %v1008, %v298
        %vm1035 = vcmp.eq.s32.totalorder %v1011, %v298
        %vm1036 = vcmp.eq.s32.totalorder %v1014, %v298
        %vm1037 = vcmp.eq.s32.totalorder %v1017, %v298
        %vm1038 = vcmp.eq.s32.totalorder %v1020, %v298
        %vm1039 = vcmp.eq.s32.totalorder %v1023, %v298
        %v1040 = vsel %vm1024, 1, 0
        %v1041 = vsel %vm1025, 1, 0
        %v1042 = vsel %vm1026, 1, 0
        %v1043 = vsel %vm1027, 1, 0
        %v1044 = vsel %vm1028, 1, 0
        %v1045 = vsel %vm1029, 1, 0
        %v1046 = vsel %vm1030, 1, 0
        %v1047 = vsel %vm1031, 1, 0
        %v1048 = vsel %vm1032, 1, 0
        %v1049 = vsel %vm1033, 1, 0
        %v1050 = vsel %vm1034, 1, 0
        %v1051 = vsel %vm1035, 1, 0
        %v1052 = vsel %vm1036, 1, 0
        %v1053 = vsel %vm1037, 1, 0
        %v1054 = vsel %vm1038, 1, 0
        %v1055 = vsel %vm1039, 1, 0
        %v1056 = vcvt.s32.f32 %v1040
        %v1057 = vcvt.s32.f32 %v1041
        %v1058 = vcvt.s32.f32 %v1042
        %v1059 = vcvt.s32.f32 %v1043
        %v1060 = vcvt.s32.f32 %v1044
        %v1061 = vcvt.s32.f32 %v1045
        %v1062 = vcvt.s32.f32 %v1046
        %v1063 = vcvt.s32.f32 %v1047
        %v1064 = vcvt.s32.f32 %v1048
        %v1065 = vcvt.s32.f32 %v1049
        %v1066 = vcvt.s32.f32 %v1050
        %v1067 = vcvt.s32.f32 %v1051
        %v1068 = vcvt.s32.f32 %v1052
        %v1069 = vcvt.s32.f32 %v1053
        %v1070 = vcvt.s32.f32 %v1054
        %v1071 = vcvt.s32.f32 %v1055
        %v1073 = vsel %vm395, %v1056, 0
        %v1076 = vsel %vm395, %v1057, 0
        %v1079 = vsel %vm395, %v1058, 0
        %v1082 = vsel %vm395, %v1059, 0
        %v1085 = vsel %vm395, %v1060, 0
        %v1088 = vsel %vm395, %v1061, 0
        %v1091 = vsel %vm395, %v1062, 0
        %v1094 = vsel %vm395, %v1063, 0
        %v1097 = vsel %vm395, %v1064, 0
        %v1100 = vsel %vm395, %v1065, 0
        %v1103 = vsel %vm395, %v1066, 0
        %v1106 = vsel %vm395, %v1067, 0
        %v1109 = vsel %vm395, %v1068, 0
        %v1112 = vsel %vm395, %v1069, 0
        %v1115 = vsel %vm395, %v1070, 0
        %v1118 = vsel %vm395, %v1071, 0
        %1120 = vmatprep.subr.mxu0 0.0
        %1121 = vmatpush1.msra.mxu0 0.0
        %1122 = vmatprep.subr.mxu0 0.0
        %1123 = vmatpush1.msra.mxu0 0.0
        %1124 = vmatprep.subr.mxu0 0.0
        %1125 = vmatpush1.msra.mxu0 0.0
        %1126 = vmatprep.subr.mxu0 0.0
        %1127 = vmatpush1.msra.mxu0 0.0
        %1128 = vmatprep.subr.mxu0 0.0
        %1129 = vmatpush1.msra.mxu0 0.0
        %1130 = vmatprep.subr.mxu0 0.0
        %1131 = vmatpush1.msra.mxu0 0.0
        %1132 = vmatprep.subr.mxu0 0.0
        %1133 = vmatpush1.msra.mxu0 0.0
        %1134 = vmatprep.subr.mxu0 0.0
        %1135 = vmatpush1.msra.mxu0 0.0
        %1136 = vmatprep.subr.mxu0 0.0
        %1137 = vmatpush1.msra.mxu0 0.0
        %1138 = vmatprep.subr.mxu0 0.0
        %1139 = vmatpush1.msra.mxu0 0.0
        %1140 = vmatprep.subr.mxu0 0.0
        %1141 = vmatpush1.msra.mxu0 0.0
        %1142 = vmatprep.subr.mxu0 0.0
        %1143 = vmatpush1.msra.mxu0 0.0
        %1144 = vmatprep.subr.mxu0 0.0
        %1145 = vmatpush1.msra.mxu0 0.0
        %1146 = vmatprep.subr.mxu0 0.0
        %1147 = vmatpush1.msra.mxu0 %v280
        %1148 = vmatprep.subr.mxu0 0.0
        %1149 = vmatpush1.msra.mxu0 %v279
        %1150 = vmatprep.subr.mxu0 0.0
        %1151 = vmatpush1.msra.mxu0 %v278
        %1152 = vmatprep.subr.mxu0 0.0
        %1153 = vmatpush2.msra.mxu0 0.0
        %1154 = vmatprep.subr.mxu0 0.0
        %1155 = vmatpush2.msra.mxu0 0.0
        %1156 = vmatprep.subr.mxu0 0.0
        %1157 = vmatpush2.msra.mxu0 0.0
        %1158 = vmatprep.subr.mxu0 0.0
        %1159 = vmatpush2.msra.mxu0 0.0
        %1160 = vmatprep.subr.mxu0 0.0
        %1161 = vmatpush2.msra.mxu0 0.0
        %1162 = vmatprep.subr.mxu0 0.0
        %1163 = vmatpush2.msra.mxu0 0.0
        %1164 = vmatprep.subr.mxu0 0.0
        %1165 = vmatpush2.msra.mxu0 0.0
        %1166 = vmatprep.subr.mxu0 0.0
        %1167 = vmatpush2.msra.mxu0 0.0
        %1168 = vmatprep.subr.mxu0 0.0
        %1169 = vmatpush2.msra.mxu0 0.0
        %1170 = vmatprep.subr.mxu0 0.0
        %1171 = vmatpush2.msra.mxu0 0.0
        %1172 = vmatprep.subr.mxu0 0.0
        %1173 = vmatpush2.msra.mxu0 0.0
        %1174 = vmatprep.subr.mxu0 0.0
        %1175 = vmatpush2.msra.mxu0 0.0
        %1176 = vmatprep.subr.mxu0 0.0
        %1177 = vmatpush2.msra.mxu0 0.0
        %1178 = vmatprep.subr.mxu0 0.0
        %1179 = vmatpush2.msra.mxu0 0.0
        %1180 = vmatprep.subr.mxu0 0.0
        %1181 = vmatpush2.msra.mxu0 0.0
        %1182 = vmatprep.subr.mxu0 0.0
        %1183 = vmatpush2.msra.mxu0 0.0
        %1184 = vmatprep.mubr.f32.mxu0 0.0
        %1185 = vmatmul.mubr.f32.gmra.mxu0 %v1073
        %v1186 = vpop.f32.mrf.mxu0
        %v1187 = vadd.f32 0.0, %v1186
        %v1188 = vpop.f32.mrf.mxu0
        %1189 = vmatprep.mubr.f32.mxu0 0.0
        %1190 = vmatmul.mubr.f32.gmra.mxu0 %v1076
        %v1191 = vpop.f32.mrf.mxu0
        %v1192 = vadd.f32 0.0, %v1191
        %v1193 = vpop.f32.mrf.mxu0
        %1194 = vmatprep.mubr.f32.mxu0 0.0
        %1195 = vmatmul.mubr.f32.gmra.mxu0 %v1079
        %v1196 = vpop.f32.mrf.mxu0
        %v1197 = vadd.f32 0.0, %v1196
        %v1198 = vpop.f32.mrf.mxu0
        %1199 = vmatprep.mubr.f32.mxu0 0.0
        %1200 = vmatmul.mubr.f32.gmra.mxu0 %v1082
        %v1201 = vpop.f32.mrf.mxu0
        %v1202 = vadd.f32 0.0, %v1201
        %v1203 = vpop.f32.mrf.mxu0
        %1204 = vmatprep.mubr.f32.mxu0 0.0
        %1205 = vmatmul.mubr.f32.gmra.mxu0 %v1085
        %v1206 = vpop.f32.mrf.mxu0
        %v1207 = vadd.f32 0.0, %v1206
        %v1208 = vpop.f32.mrf.mxu0
        %1209 = vmatprep.mubr.f32.mxu0 0.0
        %1210 = vmatmul.mubr.f32.gmra.mxu0 %v1088
        %v1211 = vpop.f32.mrf.mxu0
        %v1212 = vadd.f32 0.0, %v1211
        %v1213 = vpop.f32.mrf.mxu0
        %1214 = vmatprep.mubr.f32.mxu0 0.0
        %1215 = vmatmul.mubr.f32.gmra.mxu0 %v1091
        %v1216 = vpop.f32.mrf.mxu0
        %v1217 = vadd.f32 0.0, %v1216
        %v1218 = vpop.f32.mrf.mxu0
        %1219 = vmatprep.mubr.f32.mxu0 0.0
        %1220 = vmatmul.mubr.f32.gmra.mxu0 %v1094
        %v1221 = vpop.f32.mrf.mxu0
        %v1222 = vadd.f32 0.0, %v1221
        %v1223 = vpop.f32.mrf.mxu0
        %1224 = vmatprep.mubr.f32.mxu0 0.0
        %1225 = vmatmul.mubr.f32.gmra.mxu0 %v1097
        %v1226 = vpop.f32.mrf.mxu0
        %v1227 = vadd.f32 0.0, %v1226
        %v1228 = vpop.f32.mrf.mxu0
        %1229 = vmatprep.mubr.f32.mxu0 0.0
        %1230 = vmatmul.mubr.f32.gmra.mxu0 %v1100
        %v1231 = vpop.f32.mrf.mxu0
        %v1232 = vadd.f32 0.0, %v1231
        %v1233 = vpop.f32.mrf.mxu0
        %1234 = vmatprep.mubr.f32.mxu0 0.0
        %1235 = vmatmul.mubr.f32.gmra.mxu0 %v1103
        %v1236 = vpop.f32.mrf.mxu0
        %v1237 = vadd.f32 0.0, %v1236
        %v1238 = vpop.f32.mrf.mxu0
        %1239 = vmatprep.mubr.f32.mxu0 0.0
        %1240 = vmatmul.mubr.f32.gmra.mxu0 %v1106
        %v1241 = vpop.f32.mrf.mxu0
        %v1242 = vadd.f32 0.0, %v1241
        %v1243 = vpop.f32.mrf.mxu0
        %1244 = vmatprep.mubr.f32.mxu0 0.0
        %1245 = vmatmul.mubr.f32.gmra.mxu0 %v1109
        %v1246 = vpop.f32.mrf.mxu0
        %v1247 = vadd.f32 0.0, %v1246
        %v1248 = vpop.f32.mrf.mxu0
        %1249 = vmatprep.mubr.f32.mxu0 0.0
        %1250 = vmatmul.mubr.f32.gmra.mxu0 %v1112
        %v1251 = vpop.f32.mrf.mxu0
        %v1252 = vadd.f32 0.0, %v1251
        %v1253 = vpop.f32.mrf.mxu0
        %1254 = vmatprep.mubr.f32.mxu0 0.0
        %1255 = vmatmul.mubr.f32.gmra.mxu0 %v1115
        %v1256 = vpop.f32.mrf.mxu0
        %v1257 = vadd.f32 0.0, %v1256
        %v1258 = vpop.f32.mrf.mxu0
        %1259 = vmatprep.mubr.f32.mxu0 0.0
        %1260 = vmatmul.mubr.f32.gmra.mxu0 %v1118
        %v1261 = vpop.f32.mrf.mxu0
        %v1262 = vadd.f32 0.0, %v1261
        %v1263 = vpop.f32.mrf.mxu0
        %1264 = vdwg.mxu0
        %1281 = vrot.lane.b32.xlu0 %v1187, 64
        %v1282 = vpop.permute.xlu0 %1281
        %1283 = vrot.lane.b32.xlu0 %v1192, 64
        %v1284 = vpop.permute.xlu0 %1283
        %1285 = vrot.lane.b32.xlu0 %v1197, 64
        %v1286 = vpop.permute.xlu0 %1285
        %1287 = vrot.lane.b32.xlu0 %v1202, 64
        %v1288 = vpop.permute.xlu0 %1287
        %1289 = vrot.lane.b32.xlu0 %v1207, 64
        %v1290 = vpop.permute.xlu0 %1289
        %1291 = vrot.lane.b32.xlu0 %v1212, 64
        %v1292 = vpop.permute.xlu0 %1291
        %1293 = vrot.lane.b32.xlu0 %v1217, 64
        %v1294 = vpop.permute.xlu0 %1293
        %1295 = vrot.lane.b32.xlu0 %v1222, 64
        %v1296 = vpop.permute.xlu0 %1295
        %1297 = vrot.lane.b32.xlu0 %v1227, 64
        %v1298 = vpop.permute.xlu0 %1297
        %1299 = vrot.lane.b32.xlu0 %v1232, 64
        %v1300 = vpop.permute.xlu0 %1299
        %1301 = vrot.lane.b32.xlu0 %v1237, 64
        %v1302 = vpop.permute.xlu0 %1301
        %1303 = vrot.lane.b32.xlu0 %v1242, 64
        %v1304 = vpop.permute.xlu0 %1303
        %1305 = vrot.lane.b32.xlu0 %v1247, 64
        %v1306 = vpop.permute.xlu0 %1305
        %1307 = vrot.lane.b32.xlu0 %v1252, 64
        %v1308 = vpop.permute.xlu0 %1307
        %1309 = vrot.lane.b32.xlu0 %v1257, 64
        %v1310 = vpop.permute.xlu0 %1309
        %1311 = vrot.lane.b32.xlu0 %v1262, 64
        %v1312 = vpop.permute.xlu0 %1311
        %vm1329 = vcmask 785920
        %1330 = vst.msk [vmem:[#allocation2] sm:$0xff] %vm1329, %v1282
        %1331 = vst.msk [vmem:[#allocation2 + $0x8] sm:$0xff] %vm1329, %v1284
        %1332 = vst.msk [vmem:[#allocation2 + $0x10] sm:$0xff] %vm1329, %v1286
        %1333 = vst.msk [vmem:[#allocation2 + $0x18] sm:$0xff] %vm1329, %v1288
        %1334 = vst.msk [vmem:[#allocation2 + $0x20] sm:$0xff] %vm1329, %v1290
        %1335 = vst.msk [vmem:[#allocation2 + $0x28] sm:$0xff] %vm1329, %v1292
        %1336 = vst.msk [vmem:[#allocation2 + $0x30] sm:$0xff] %vm1329, %v1294
        %1337 = vst.msk [vmem:[#allocation2 + $0x38] sm:$0xff] %vm1329, %v1296
        %1338 = vst.msk [vmem:[#allocation2 + $0x40] sm:$0xff] %vm1329, %v1298
        %1339 = vst.msk [vmem:[#allocation2 + $0x48] sm:$0xff] %vm1329, %v1300
        %1340 = vst.msk [vmem:[#allocation2 + $0x50] sm:$0xff] %vm1329, %v1302
        %1341 = vst.msk [vmem:[#allocation2 + $0x58] sm:$0xff] %vm1329, %v1304
        %1342 = vst.msk [vmem:[#allocation2 + $0x60] sm:$0xff] %vm1329, %v1306
        %1343 = vst.msk [vmem:[#allocation2 + $0x68] sm:$0xff] %vm1329, %v1308
        %1344 = vst.msk [vmem:[#allocation2 + $0x70] sm:$0xff] %vm1329, %v1310
        %1345 = vst.msk [vmem:[#allocation2 + $0x78] sm:$0xff] %vm1329, %v1312
        %1346 = vset.pattern.permute.xlu0 3
        %1347 = vperm.xlu0 %1346, %v281
        %v1348 = vpop.permute.xlu0 %1347
        %1349 = vset.pattern.permute.xlu0 3
        %1350 = vperm.xlu0 %1349, %v282
        %v1351 = vpop.permute.xlu0 %1350
        %1352 = vset.pattern.permute.xlu0 3
        %1353 = vperm.xlu0 %1352, %v283
        %v1354 = vpop.permute.xlu0 %1353
        %1355 = vset.pattern.permute.xlu0 3
        %1356 = vperm.xlu0 %1355, %v284
        %v1357 = vpop.permute.xlu0 %1356
        %1358 = vset.pattern.permute.xlu0 3
        %1359 = vperm.xlu0 %1358, %v285
        %v1360 = vpop.permute.xlu0 %1359
        %1361 = vset.pattern.permute.xlu0 3
        %1362 = vperm.xlu0 %1361, %v286
        %v1363 = vpop.permute.xlu0 %1362
        %1364 = vset.pattern.permute.xlu0 3
        %1365 = vperm.xlu0 %1364, %v287
        %v1366 = vpop.permute.xlu0 %1365
        %1367 = vset.pattern.permute.xlu0 3
        %1368 = vperm.xlu0 %1367, %v288
        %v1369 = vpop.permute.xlu0 %1368
        %1370 = vset.pattern.permute.xlu0 3
        %1371 = vperm.xlu0 %1370, %v289
        %v1372 = vpop.permute.xlu0 %1371
        %1373 = vset.pattern.permute.xlu0 3
        %1374 = vperm.xlu0 %1373, %v290
        %v1375 = vpop.permute.xlu0 %1374
        %1376 = vset.pattern.permute.xlu0 3
        %1377 = vperm.xlu0 %1376, %v291
        %v1378 = vpop.permute.xlu0 %1377
        %1379 = vset.pattern.permute.xlu0 3
        %1380 = vperm.xlu0 %1379, %v292
        %v1381 = vpop.permute.xlu0 %1380
        %1382 = vset.pattern.permute.xlu0 3
        %1383 = vperm.xlu0 %1382, %v293
        %v1384 = vpop.permute.xlu0 %1383
        %1385 = vset.pattern.permute.xlu0 3
        %1386 = vperm.xlu0 %1385, %v294
        %v1387 = vpop.permute.xlu0 %1386
        %1388 = vset.pattern.permute.xlu0 3
        %1389 = vperm.xlu0 %1388, %v295
        %v1390 = vpop.permute.xlu0 %1389
        %1391 = vset.pattern.permute.xlu0 3
        %1392 = vperm.xlu0 %1391, %v296
        %v1393 = vpop.permute.xlu0 %1392
        %vm1394 = vcmp.eq.s32.totalorder %v1348, %v298
        %vm1395 = vcmp.eq.s32.totalorder %v1351, %v298
        %vm1396 = vcmp.eq.s32.totalorder %v1354, %v298
        %vm1397 = vcmp.eq.s32.totalorder %v1357, %v298
        %vm1398 = vcmp.eq.s32.totalorder %v1360, %v298
        %vm1399 = vcmp.eq.s32.totalorder %v1363, %v298
        %vm1400 = vcmp.eq.s32.totalorder %v1366, %v298
        %vm1401 = vcmp.eq.s32.totalorder %v1369, %v298
        %vm1402 = vcmp.eq.s32.totalorder %v1372, %v298
        %vm1403 = vcmp.eq.s32.totalorder %v1375, %v298
        %vm1404 = vcmp.eq.s32.totalorder %v1378, %v298
        %vm1405 = vcmp.eq.s32.totalorder %v1381, %v298
        %vm1406 = vcmp.eq.s32.totalorder %v1384, %v298
        %vm1407 = vcmp.eq.s32.totalorder %v1387, %v298
        %vm1408 = vcmp.eq.s32.totalorder %v1390, %v298
        %vm1409 = vcmp.eq.s32.totalorder %v1393, %v298
        %v1410 = vsel %vm1394, 1, 0
        %v1411 = vsel %vm1395, 1, 0
        %v1412 = vsel %vm1396, 1, 0
        %v1413 = vsel %vm1397, 1, 0
        %v1414 = vsel %vm1398, 1, 0
        %v1415 = vsel %vm1399, 1, 0
        %v1416 = vsel %vm1400, 1, 0
        %v1417 = vsel %vm1401, 1, 0
        %v1418 = vsel %vm1402, 1, 0
        %v1419 = vsel %vm1403, 1, 0
        %v1420 = vsel %vm1404, 1, 0
        %v1421 = vsel %vm1405, 1, 0
        %v1422 = vsel %vm1406, 1, 0
        %v1423 = vsel %vm1407, 1, 0
        %v1424 = vsel %vm1408, 1, 0
        %v1425 = vsel %vm1409, 1, 0
        %v1426 = vcvt.s32.f32 %v1410
        %v1427 = vcvt.s32.f32 %v1411
        %v1428 = vcvt.s32.f32 %v1412
        %v1429 = vcvt.s32.f32 %v1413
        %v1430 = vcvt.s32.f32 %v1414
        %v1431 = vcvt.s32.f32 %v1415
        %v1432 = vcvt.s32.f32 %v1416
        %v1433 = vcvt.s32.f32 %v1417
        %v1434 = vcvt.s32.f32 %v1418
        %v1435 = vcvt.s32.f32 %v1419
        %v1436 = vcvt.s32.f32 %v1420
        %v1437 = vcvt.s32.f32 %v1421
        %v1438 = vcvt.s32.f32 %v1422
        %v1439 = vcvt.s32.f32 %v1423
        %v1440 = vcvt.s32.f32 %v1424
        %v1441 = vcvt.s32.f32 %v1425
        %v1443 = vsel %vm395, %v1426, 0
        %v1446 = vsel %vm395, %v1427, 0
        %v1449 = vsel %vm395, %v1428, 0
        %v1452 = vsel %vm395, %v1429, 0
        %v1455 = vsel %vm395, %v1430, 0
        %v1458 = vsel %vm395, %v1431, 0
        %v1461 = vsel %vm395, %v1432, 0
        %v1464 = vsel %vm395, %v1433, 0
        %v1467 = vsel %vm395, %v1434, 0
        %v1470 = vsel %vm395, %v1435, 0
        %v1473 = vsel %vm395, %v1436, 0
        %v1476 = vsel %vm395, %v1437, 0
        %v1479 = vsel %vm395, %v1438, 0
        %v1482 = vsel %vm395, %v1439, 0
        %v1485 = vsel %vm395, %v1440, 0
        %v1488 = vsel %vm395, %v1441, 0
        %1490 = vmatprep.subr.mxu0 0.0
        %1491 = vmatpush1.msra.mxu0 0.0
        %1492 = vmatprep.subr.mxu0 0.0
        %1493 = vmatpush1.msra.mxu0 0.0
        %1494 = vmatprep.subr.mxu0 0.0
        %1495 = vmatpush1.msra.mxu0 0.0
        %1496 = vmatprep.subr.mxu0 0.0
        %1497 = vmatpush1.msra.mxu0 0.0
        %1498 = vmatprep.subr.mxu0 0.0
        %1499 = vmatpush1.msra.mxu0 0.0
        %1500 = vmatprep.subr.mxu0 0.0
        %1501 = vmatpush1.msra.mxu0 0.0
        %1502 = vmatprep.subr.mxu0 0.0
        %1503 = vmatpush1.msra.mxu0 0.0
        %1504 = vmatprep.subr.mxu0 0.0
        %1505 = vmatpush1.msra.mxu0 0.0
        %1506 = vmatprep.subr.mxu0 0.0
        %1507 = vmatpush1.msra.mxu0 0.0
        %1508 = vmatprep.subr.mxu0 0.0
        %1509 = vmatpush1.msra.mxu0 0.0
        %1510 = vmatprep.subr.mxu0 0.0
        %1511 = vmatpush1.msra.mxu0 0.0
        %1512 = vmatprep.subr.mxu0 0.0
        %1513 = vmatpush1.msra.mxu0 0.0
        %1514 = vmatprep.subr.mxu0 0.0
        %1515 = vmatpush1.msra.mxu0 0.0
        %1516 = vmatprep.subr.mxu0 0.0
        %1517 = vmatpush1.msra.mxu0 %v280
        %1518 = vmatprep.subr.mxu0 0.0
        %1519 = vmatpush1.msra.mxu0 %v279
        %1520 = vmatprep.subr.mxu0 0.0
        %1521 = vmatpush1.msra.mxu0 %v278
        %1522 = vmatprep.subr.mxu0 0.0
        %1523 = vmatpush2.msra.mxu0 0.0
        %1524 = vmatprep.subr.mxu0 0.0
        %1525 = vmatpush2.msra.mxu0 0.0
        %1526 = vmatprep.subr.mxu0 0.0
        %1527 = vmatpush2.msra.mxu0 0.0
        %1528 = vmatprep.subr.mxu0 0.0
        %1529 = vmatpush2.msra.mxu0 0.0
        %1530 = vmatprep.subr.mxu0 0.0
        %1531 = vmatpush2.msra.mxu0 0.0
        %1532 = vmatprep.subr.mxu0 0.0
        %1533 = vmatpush2.msra.mxu0 0.0
        %1534 = vmatprep.subr.mxu0 0.0
        %1535 = vmatpush2.msra.mxu0 0.0
        %1536 = vmatprep.subr.mxu0 0.0
        %1537 = vmatpush2.msra.mxu0 0.0
        %1538 = vmatprep.subr.mxu0 0.0
        %1539 = vmatpush2.msra.mxu0 0.0
        %1540 = vmatprep.subr.mxu0 0.0
        %1541 = vmatpush2.msra.mxu0 0.0
        %1542 = vmatprep.subr.mxu0 0.0
        %1543 = vmatpush2.msra.mxu0 0.0
        %1544 = vmatprep.subr.mxu0 0.0
        %1545 = vmatpush2.msra.mxu0 0.0
        %1546 = vmatprep.subr.mxu0 0.0
        %1547 = vmatpush2.msra.mxu0 0.0
        %1548 = vmatprep.subr.mxu0 0.0
        %1549 = vmatpush2.msra.mxu0 0.0
        %1550 = vmatprep.subr.mxu0 0.0
        %1551 = vmatpush2.msra.mxu0 0.0
        %1552 = vmatprep.subr.mxu0 0.0
        %1553 = vmatpush2.msra.mxu0 0.0
        %1554 = vmatprep.mubr.f32.mxu0 0.0
        %1555 = vmatmul.mubr.f32.gmra.mxu0 %v1443
        %v1556 = vpop.f32.mrf.mxu0
        %v1557 = vadd.f32 0.0, %v1556
        %v1558 = vpop.f32.mrf.mxu0
        %1559 = vmatprep.mubr.f32.mxu0 0.0
        %1560 = vmatmul.mubr.f32.gmra.mxu0 %v1446
        %v1561 = vpop.f32.mrf.mxu0
        %v1562 = vadd.f32 0.0, %v1561
        %v1563 = vpop.f32.mrf.mxu0
        %1564 = vmatprep.mubr.f32.mxu0 0.0
        %1565 = vmatmul.mubr.f32.gmra.mxu0 %v1449
        %v1566 = vpop.f32.mrf.mxu0
        %v1567 = vadd.f32 0.0, %v1566
        %v1568 = vpop.f32.mrf.mxu0
        %1569 = vmatprep.mubr.f32.mxu0 0.0
        %1570 = vmatmul.mubr.f32.gmra.mxu0 %v1452
        %v1571 = vpop.f32.mrf.mxu0
        %v1572 = vadd.f32 0.0, %v1571
        %v1573 = vpop.f32.mrf.mxu0
        %1574 = vmatprep.mubr.f32.mxu0 0.0
        %1575 = vmatmul.mubr.f32.gmra.mxu0 %v1455
        %v1576 = vpop.f32.mrf.mxu0
        %v1577 = vadd.f32 0.0, %v1576
        %v1578 = vpop.f32.mrf.mxu0
        %1579 = vmatprep.mubr.f32.mxu0 0.0
        %1580 = vmatmul.mubr.f32.gmra.mxu0 %v1458
        %v1581 = vpop.f32.mrf.mxu0
        %v1582 = vadd.f32 0.0, %v1581
        %v1583 = vpop.f32.mrf.mxu0
        %1584 = vmatprep.mubr.f32.mxu0 0.0
        %1585 = vmatmul.mubr.f32.gmra.mxu0 %v1461
        %v1586 = vpop.f32.mrf.mxu0
        %v1587 = vadd.f32 0.0, %v1586
        %v1588 = vpop.f32.mrf.mxu0
        %1589 = vmatprep.mubr.f32.mxu0 0.0
        %1590 = vmatmul.mubr.f32.gmra.mxu0 %v1464
        %v1591 = vpop.f32.mrf.mxu0
        %v1592 = vadd.f32 0.0, %v1591
        %v1593 = vpop.f32.mrf.mxu0
        %1594 = vmatprep.mubr.f32.mxu0 0.0
        %1595 = vmatmul.mubr.f32.gmra.mxu0 %v1467
        %v1596 = vpop.f32.mrf.mxu0
        %v1597 = vadd.f32 0.0, %v1596
        %v1598 = vpop.f32.mrf.mxu0
        %1599 = vmatprep.mubr.f32.mxu0 0.0
        %1600 = vmatmul.mubr.f32.gmra.mxu0 %v1470
        %v1601 = vpop.f32.mrf.mxu0
        %v1602 = vadd.f32 0.0, %v1601
        %v1603 = vpop.f32.mrf.mxu0
        %1604 = vmatprep.mubr.f32.mxu0 0.0
        %1605 = vmatmul.mubr.f32.gmra.mxu0 %v1473
        %v1606 = vpop.f32.mrf.mxu0
        %v1607 = vadd.f32 0.0, %v1606
        %v1608 = vpop.f32.mrf.mxu0
        %1609 = vmatprep.mubr.f32.mxu0 0.0
        %1610 = vmatmul.mubr.f32.gmra.mxu0 %v1476
        %v1611 = vpop.f32.mrf.mxu0
        %v1612 = vadd.f32 0.0, %v1611
        %v1613 = vpop.f32.mrf.mxu0
        %1614 = vmatprep.mubr.f32.mxu0 0.0
        %1615 = vmatmul.mubr.f32.gmra.mxu0 %v1479
        %v1616 = vpop.f32.mrf.mxu0
        %v1617 = vadd.f32 0.0, %v1616
        %v1618 = vpop.f32.mrf.mxu0
        %1619 = vmatprep.mubr.f32.mxu0 0.0
        %1620 = vmatmul.mubr.f32.gmra.mxu0 %v1482
        %v1621 = vpop.f32.mrf.mxu0
        %v1622 = vadd.f32 0.0, %v1621
        %v1623 = vpop.f32.mrf.mxu0
        %1624 = vmatprep.mubr.f32.mxu0 0.0
        %1625 = vmatmul.mubr.f32.gmra.mxu0 %v1485
        %v1626 = vpop.f32.mrf.mxu0
        %v1627 = vadd.f32 0.0, %v1626
        %v1628 = vpop.f32.mrf.mxu0
        %1629 = vmatprep.mubr.f32.mxu0 0.0
        %1630 = vmatmul.mubr.f32.gmra.mxu0 %v1488
        %v1631 = vpop.f32.mrf.mxu0
        %v1632 = vadd.f32 0.0, %v1631
        %v1633 = vpop.f32.mrf.mxu0
        %1634 = vdwg.mxu0
        %1651 = vrot.lane.b32.xlu0 %v1557, 96
        %v1652 = vpop.permute.xlu0 %1651
        %1653 = vrot.lane.b32.xlu0 %v1562, 96
        %v1654 = vpop.permute.xlu0 %1653
        %1655 = vrot.lane.b32.xlu0 %v1567, 96
        %v1656 = vpop.permute.xlu0 %1655
        %1657 = vrot.lane.b32.xlu0 %v1572, 96
        %v1658 = vpop.permute.xlu0 %1657
        %1659 = vrot.lane.b32.xlu0 %v1577, 96
        %v1660 = vpop.permute.xlu0 %1659
        %1661 = vrot.lane.b32.xlu0 %v1582, 96
        %v1662 = vpop.permute.xlu0 %1661
        %1663 = vrot.lane.b32.xlu0 %v1587, 96
        %v1664 = vpop.permute.xlu0 %1663
        %1665 = vrot.lane.b32.xlu0 %v1592, 96
        %v1666 = vpop.permute.xlu0 %1665
        %1667 = vrot.lane.b32.xlu0 %v1597, 96
        %v1668 = vpop.permute.xlu0 %1667
        %1669 = vrot.lane.b32.xlu0 %v1602, 96
        %v1670 = vpop.permute.xlu0 %1669
        %1671 = vrot.lane.b32.xlu0 %v1607, 96
        %v1672 = vpop.permute.xlu0 %1671
        %1673 = vrot.lane.b32.xlu0 %v1612, 96
        %v1674 = vpop.permute.xlu0 %1673
        %1675 = vrot.lane.b32.xlu0 %v1617, 96
        %v1676 = vpop.permute.xlu0 %1675
        %1677 = vrot.lane.b32.xlu0 %v1622, 96
        %v1678 = vpop.permute.xlu0 %1677
        %1679 = vrot.lane.b32.xlu0 %v1627, 96
        %v1680 = vpop.permute.xlu0 %1679
        %1681 = vrot.lane.b32.xlu0 %v1632, 96
        %v1682 = vpop.permute.xlu0 %1681
        %vm1699 = vcmask 1048320
        %1700 = vst.msk [vmem:[#allocation2] sm:$0xff] %vm1699, %v1652
        %1701 = vst.msk [vmem:[#allocation2 + $0x8] sm:$0xff] %vm1699, %v1654
        %1702 = vst.msk [vmem:[#allocation2 + $0x10] sm:$0xff] %vm1699, %v1656
        %1703 = vst.msk [vmem:[#allocation2 + $0x18] sm:$0xff] %vm1699, %v1658
        %1704 = vst.msk [vmem:[#allocation2 + $0x20] sm:$0xff] %vm1699, %v1660
        %1705 = vst.msk [vmem:[#allocation2 + $0x28] sm:$0xff] %vm1699, %v1662
        %1706 = vst.msk [vmem:[#allocation2 + $0x30] sm:$0xff] %vm1699, %v1664
        %1707 = vst.msk [vmem:[#allocation2 + $0x38] sm:$0xff] %vm1699, %v1666
        %1708 = vst.msk [vmem:[#allocation2 + $0x40] sm:$0xff] %vm1699, %v1668
        %1709 = vst.msk [vmem:[#allocation2 + $0x48] sm:$0xff] %vm1699, %v1670
        %1710 = vst.msk [vmem:[#allocation2 + $0x50] sm:$0xff] %vm1699, %v1672
        %1711 = vst.msk [vmem:[#allocation2 + $0x58] sm:$0xff] %vm1699, %v1674
        %1712 = vst.msk [vmem:[#allocation2 + $0x60] sm:$0xff] %vm1699, %v1676
        %1713 = vst.msk [vmem:[#allocation2 + $0x68] sm:$0xff] %vm1699, %v1678
        %1714 = vst.msk [vmem:[#allocation2 + $0x70] sm:$0xff] %vm1699, %v1680
        %1715 = vst.msk [vmem:[#allocation2 + $0x78] sm:$0xff] %vm1699, %v1682
        %v1716 = vld [vmem:[#allocation2] sm:$0xff]
        %v1717 = vld [vmem:[#allocation2 + $0x8] sm:$0xff]
        %v1718 = vld [vmem:[#allocation2 + $0x10] sm:$0xff]
        %v1719 = vld [vmem:[#allocation2 + $0x18] sm:$0xff]
        %v1720 = vld [vmem:[#allocation2 + $0x20] sm:$0xff]
        %v1721 = vld [vmem:[#allocation2 + $0x28] sm:$0xff]
        %v1722 = vld [vmem:[#allocation2 + $0x30] sm:$0xff]
        %v1723 = vld [vmem:[#allocation2 + $0x38] sm:$0xff]
        %v1724 = vld [vmem:[#allocation2 + $0x40] sm:$0xff]
        %v1725 = vld [vmem:[#allocation2 + $0x48] sm:$0xff]
        %v1726 = vld [vmem:[#allocation2 + $0x50] sm:$0xff]
        %v1727 = vld [vmem:[#allocation2 + $0x58] sm:$0xff]
        %v1728 = vld [vmem:[#allocation2 + $0x60] sm:$0xff]
        %v1729 = vld [vmem:[#allocation2 + $0x68] sm:$0xff]
        %v1730 = vld [vmem:[#allocation2 + $0x70] sm:$0xff]
        %v1731 = vld [vmem:[#allocation2 + $0x78] sm:$0xff]
        %v1732 = vld [vmem:[%s2] sm:$0x1]
        %v1733 = vld [vmem:[%s3] sm:$0x1]
        %v1734 = vlaneseq
        %v1735 = vshrl.u32 %v1734, 7
        %v1736 = vsub.s32 0, %v1735
        %v1737 = vrot.slane %v1732, %v1736
        %v1738 = vmul.f32 %v1716, %v1737
        %v1739 = vmul.f32 %v1717, %v1737
        %v1740 = vmul.f32 %v1718, %v1737
        %v1741 = vmul.f32 %v1719, %v1737
        %v1742 = vmul.f32 %v1720, %v1737
        %v1743 = vmul.f32 %v1721, %v1737
        %v1744 = vmul.f32 %v1722, %v1737
        %v1745 = vmul.f32 %v1723, %v1737
        %v1746 = vmul.f32 %v1724, %v1737
        %v1747 = vmul.f32 %v1725, %v1737
        %v1748 = vmul.f32 %v1726, %v1737
        %v1749 = vmul.f32 %v1727, %v1737
        %v1750 = vmul.f32 %v1728, %v1737
        %v1751 = vmul.f32 %v1729, %v1737
        %v1752 = vmul.f32 %v1730, %v1737
        %v1753 = vmul.f32 %v1731, %v1737
        %1754 = vadd.xlane.f32.xlu0 %v1738
        %v1755 = vpop.xlane.xlu0 %1754
        %1756 = vadd.xlane.f32.xlu0 %v1739
        %v1757 = vpop.xlane.xlu0 %1756
        %1758 = vadd.xlane.f32.xlu0 %v1740
        %v1759 = vpop.xlane.xlu0 %1758
        %1760 = vadd.xlane.f32.xlu0 %v1741
        %v1761 = vpop.xlane.xlu0 %1760
        %1762 = vadd.xlane.f32.xlu0 %v1742
        %v1763 = vpop.xlane.xlu0 %1762
        %1764 = vadd.xlane.f32.xlu0 %v1743
        %v1765 = vpop.xlane.xlu0 %1764
        %1766 = vadd.xlane.f32.xlu0 %v1744
        %v1767 = vpop.xlane.xlu0 %1766
        %1768 = vadd.xlane.f32.xlu0 %v1745
        %v1769 = vpop.xlane.xlu0 %1768
        %1770 = vadd.xlane.f32.xlu0 %v1746
        %v1771 = vpop.xlane.xlu0 %1770
        %1772 = vadd.xlane.f32.xlu0 %v1747
        %v1773 = vpop.xlane.xlu0 %1772
        %1774 = vadd.xlane.f32.xlu0 %v1748
        %v1775 = vpop.xlane.xlu0 %1774
        %1776 = vadd.xlane.f32.xlu0 %v1749
        %v1777 = vpop.xlane.xlu0 %1776
        %1778 = vadd.xlane.f32.xlu0 %v1750
        %v1779 = vpop.xlane.xlu0 %1778
        %1780 = vadd.xlane.f32.xlu0 %v1751
        %v1781 = vpop.xlane.xlu0 %1780
        %1782 = vadd.xlane.f32.xlu0 %v1752
        %v1783 = vpop.xlane.xlu0 %1782
        %1784 = vadd.xlane.f32.xlu0 %v1753
        %v1785 = vpop.xlane.xlu0 %1784
        %v1786 = vmul.f32 %v1716, %v1755
        %v1787 = vmul.f32 %v1717, %v1757
        %v1788 = vmul.f32 %v1718, %v1759
        %v1789 = vmul.f32 %v1719, %v1761
        %v1790 = vmul.f32 %v1720, %v1763
        %v1791 = vmul.f32 %v1721, %v1765
        %v1792 = vmul.f32 %v1722, %v1767
        %v1793 = vmul.f32 %v1723, %v1769
        %v1794 = vmul.f32 %v1724, %v1771
        %v1795 = vmul.f32 %v1725, %v1773
        %v1796 = vmul.f32 %v1726, %v1775
        %v1797 = vmul.f32 %v1727, %v1777
        %v1798 = vmul.f32 %v1728, %v1779
        %v1799 = vmul.f32 %v1729, %v1781
        %v1800 = vmul.f32 %v1730, %v1783
        %v1801 = vmul.f32 %v1731, %v1785
        %v1802 = vlaneseq
        %v1803 = vshrl.u32 %v1802, 7
        %v1804 = vsub.s32 0, %v1803
        %v1805 = vrot.slane %v1733, %v1804
        %v1806 = vadd.f32 %v1786, %v1805
        %v1807 = vadd.f32 %v1787, %v1805
        %v1808 = vadd.f32 %v1788, %v1805
        %v1809 = vadd.f32 %v1789, %v1805
        %v1810 = vadd.f32 %v1790, %v1805
        %v1811 = vadd.f32 %v1791, %v1805
        %v1812 = vadd.f32 %v1792, %v1805
        %v1813 = vadd.f32 %v1793, %v1805
        %v1814 = vadd.f32 %v1794, %v1805
        %v1815 = vadd.f32 %v1795, %v1805
        %v1816 = vadd.f32 %v1796, %v1805
        %v1817 = vadd.f32 %v1797, %v1805
        %v1818 = vadd.f32 %v1798, %v1805
        %v1819 = vadd.f32 %v1799, %v1805
        %v1820 = vadd.f32 %v1800, %v1805
        %v1821 = vadd.f32 %v1801, %v1805
        %v1822 = vadd.f32 %v1806, %v1716
        %v1823 = vadd.f32 %v1807, %v1717
        %v1824 = vadd.f32 %v1808, %v1718
        %v1825 = vadd.f32 %v1809, %v1719
        %v1826 = vadd.f32 %v1810, %v1720
        %v1827 = vadd.f32 %v1811, %v1721
        %v1828 = vadd.f32 %v1812, %v1722
        %v1829 = vadd.f32 %v1813, %v1723
        %v1830 = vadd.f32 %v1814, %v1724
        %v1831 = vadd.f32 %v1815, %v1725
        %v1832 = vadd.f32 %v1816, %v1726
        %v1833 = vadd.f32 %v1817, %v1727
        %v1834 = vadd.f32 %v1818, %v1728
        %v1835 = vadd.f32 %v1819, %v1729
        %v1836 = vadd.f32 %v1820, %v1730
        %v1837 = vadd.f32 %v1821, %v1731
        %v1838 = vld [vmem:[%s2 + $0x1] sm:$0x1]
        %v1839 = vld [vmem:[%s3 + $0x1] sm:$0x1]
        %v1840 = vlaneseq
        %v1841 = vshrl.u32 %v1840, 7
        %v1842 = vsub.s32 0, %v1841
        %v1843 = vrot.slane %v1838, %v1842
        %v1844 = vmul.f32 %v1822, %v1843
        %v1845 = vmul.f32 %v1823, %v1843
        %v1846 = vmul.f32 %v1824, %v1843
        %v1847 = vmul.f32 %v1825, %v1843
        %v1848 = vmul.f32 %v1826, %v1843
        %v1849 = vmul.f32 %v1827, %v1843
        %v1850 = vmul.f32 %v1828, %v1843
        %v1851 = vmul.f32 %v1829, %v1843
        %v1852 = vmul.f32 %v1830, %v1843
        %v1853 = vmul.f32 %v1831, %v1843
        %v1854 = vmul.f32 %v1832, %v1843
        %v1855 = vmul.f32 %v1833, %v1843
        %v1856 = vmul.f32 %v1834, %v1843
        %v1857 = vmul.f32 %v1835, %v1843
        %v1858 = vmul.f32 %v1836, %v1843
        %v1859 = vmul.f32 %v1837, %v1843
        %1860 = vadd.xlane.f32.xlu0 %v1844
        %v1861 = vpop.xlane.xlu0 %1860
        %1862 = vadd.xlane.f32.xlu0 %v1845
        %v1863 = vpop.xlane.xlu0 %1862
        %1864 = vadd.xlane.f32.xlu0 %v1846
        %v1865 = vpop.xlane.xlu0 %1864
        %1866 = vadd.xlane.f32.xlu0 %v1847
        %v1867 = vpop.xlane.xlu0 %1866
        %1868 = vadd.xlane.f32.xlu0 %v1848
        %v1869 = vpop.xlane.xlu0 %1868
        %1870 = vadd.xlane.f32.xlu0 %v1849
        %v1871 = vpop.xlane.xlu0 %1870
        %1872 = vadd.xlane.f32.xlu0 %v1850
        %v1873 = vpop.xlane.xlu0 %1872
        %1874 = vadd.xlane.f32.xlu0 %v1851
        %v1875 = vpop.xlane.xlu0 %1874
        %1876 = vadd.xlane.f32.xlu0 %v1852
        %v1877 = vpop.xlane.xlu0 %1876
        %1878 = vadd.xlane.f32.xlu0 %v1853
        %v1879 = vpop.xlane.xlu0 %1878
        %1880 = vadd.xlane.f32.xlu0 %v1854
        %v1881 = vpop.xlane.xlu0 %1880
        %1882 = vadd.xlane.f32.xlu0 %v1855
        %v1883 = vpop.xlane.xlu0 %1882
        %1884 = vadd.xlane.f32.xlu0 %v1856
        %v1885 = vpop.xlane.xlu0 %1884
        %1886 = vadd.xlane.f32.xlu0 %v1857
        %v1887 = vpop.xlane.xlu0 %1886
        %1888 = vadd.xlane.f32.xlu0 %v1858
        %v1889 = vpop.xlane.xlu0 %1888
        %1890 = vadd.xlane.f32.xlu0 %v1859
        %v1891 = vpop.xlane.xlu0 %1890
        %v1892 = vmul.f32 %v1716, %v1861
        %v1893 = vmul.f32 %v1717, %v1863
        %v1894 = vmul.f32 %v1718, %v1865
        %v1895 = vmul.f32 %v1719, %v1867
        %v1896 = vmul.f32 %v1720, %v1869
        %v1897 = vmul.f32 %v1721, %v1871
        %v1898 = vmul.f32 %v1722, %v1873
        %v1899 = vmul.f32 %v1723, %v1875
        %v1900 = vmul.f32 %v1724, %v1877
        %v1901 = vmul.f32 %v1725, %v1879
        %v1902 = vmul.f32 %v1726, %v1881
        %v1903 = vmul.f32 %v1727, %v1883
        %v1904 = vmul.f32 %v1728, %v1885
        %v1905 = vmul.f32 %v1729, %v1887
        %v1906 = vmul.f32 %v1730, %v1889
        %v1907 = vmul.f32 %v1731, %v1891
        %v1908 = vlaneseq
        %v1909 = vshrl.u32 %v1908, 7
        %v1910 = vsub.s32 0, %v1909
        %v1911 = vrot.slane %v1839, %v1910
        %v1912 = vadd.f32 %v1892, %v1911
        %v1913 = vadd.f32 %v1893, %v1911
        %v1914 = vadd.f32 %v1894, %v1911
        %v1915 = vadd.f32 %v1895, %v1911
        %v1916 = vadd.f32 %v1896, %v1911
        %v1917 = vadd.f32 %v1897, %v1911
        %v1918 = vadd.f32 %v1898, %v1911
        %v1919 = vadd.f32 %v1899, %v1911
        %v1920 = vadd.f32 %v1900, %v1911
        %v1921 = vadd.f32 %v1901, %v1911
        %v1922 = vadd.f32 %v1902, %v1911
        %v1923 = vadd.f32 %v1903, %v1911
        %v1924 = vadd.f32 %v1904, %v1911
        %v1925 = vadd.f32 %v1905, %v1911
        %v1926 = vadd.f32 %v1906, %v1911
        %v1927 = vadd.f32 %v1907, %v1911
        %v1928 = vadd.f32 %v1912, %v1822
        %v1929 = vadd.f32 %v1913, %v1823
        %v1930 = vadd.f32 %v1914, %v1824
        %v1931 = vadd.f32 %v1915, %v1825
        %v1932 = vadd.f32 %v1916, %v1826
        %v1933 = vadd.f32 %v1917, %v1827
        %v1934 = vadd.f32 %v1918, %v1828
        %v1935 = vadd.f32 %v1919, %v1829
        %v1936 = vadd.f32 %v1920, %v1830
        %v1937 = vadd.f32 %v1921, %v1831
        %v1938 = vadd.f32 %v1922, %v1832
        %v1939 = vadd.f32 %v1923, %v1833
        %v1940 = vadd.f32 %v1924, %v1834
        %v1941 = vadd.f32 %v1925, %v1835
        %v1942 = vadd.f32 %v1926, %v1836
        %v1943 = vadd.f32 %v1927, %v1837
        %v1944 = vld [vmem:[%s2 + $0x2] sm:$0x1]
        %v1945 = vld [vmem:[%s3 + $0x2] sm:$0x1]
        %v1946 = vlaneseq
        %v1947 = vshrl.u32 %v1946, 7
        %v1948 = vsub.s32 0, %v1947
        %v1949 = vrot.slane %v1944, %v1948
        %v1950 = vmul.f32 %v1928, %v1949
        %v1951 = vmul.f32 %v1929, %v1949
        %v1952 = vmul.f32 %v1930, %v1949
        %v1953 = vmul.f32 %v1931, %v1949
        %v1954 = vmul.f32 %v1932, %v1949
        %v1955 = vmul.f32 %v1933, %v1949
        %v1956 = vmul.f32 %v1934, %v1949
        %v1957 = vmul.f32 %v1935, %v1949
        %v1958 = vmul.f32 %v1936, %v1949
        %v1959 = vmul.f32 %v1937, %v1949
        %v1960 = vmul.f32 %v1938, %v1949
        %v1961 = vmul.f32 %v1939, %v1949
        %v1962 = vmul.f32 %v1940, %v1949
        %v1963 = vmul.f32 %v1941, %v1949
        %v1964 = vmul.f32 %v1942, %v1949
        %v1965 = vmul.f32 %v1943, %v1949
        %1966 = vadd.xlane.f32.xlu0 %v1950
        %v1967 = vpop.xlane.xlu0 %1966
        %1968 = vadd.xlane.f32.xlu0 %v1951
        %v1969 = vpop.xlane.xlu0 %1968
        %1970 = vadd.xlane.f32.xlu0 %v1952
        %v1971 = vpop.xlane.xlu0 %1970
        %1972 = vadd.xlane.f32.xlu0 %v1953
        %v1973 = vpop.xlane.xlu0 %1972
        %1974 = vadd.xlane.f32.xlu0 %v1954
        %v1975 = vpop.xlane.xlu0 %1974
        %1976 = vadd.xlane.f32.xlu0 %v1955
        %v1977 = vpop.xlane.xlu0 %1976
        %1978 = vadd.xlane.f32.xlu0 %v1956
        %v1979 = vpop.xlane.xlu0 %1978
        %1980 = vadd.xlane.f32.xlu0 %v1957
        %v1981 = vpop.xlane.xlu0 %1980
        %1982 = vadd.xlane.f32.xlu0 %v1958
        %v1983 = vpop.xlane.xlu0 %1982
        %1984 = vadd.xlane.f32.xlu0 %v1959
        %v1985 = vpop.xlane.xlu0 %1984
        %1986 = vadd.xlane.f32.xlu0 %v1960
        %v1987 = vpop.xlane.xlu0 %1986
        %1988 = vadd.xlane.f32.xlu0 %v1961
        %v1989 = vpop.xlane.xlu0 %1988
        %1990 = vadd.xlane.f32.xlu0 %v1962
        %v1991 = vpop.xlane.xlu0 %1990
        %1992 = vadd.xlane.f32.xlu0 %v1963
        %v1993 = vpop.xlane.xlu0 %1992
        %1994 = vadd.xlane.f32.xlu0 %v1964
        %v1995 = vpop.xlane.xlu0 %1994
        %1996 = vadd.xlane.f32.xlu0 %v1965
        %v1997 = vpop.xlane.xlu0 %1996
        %v1998 = vmul.f32 %v1716, %v1967
        %v1999 = vmul.f32 %v1717, %v1969
        %v2000 = vmul.f32 %v1718, %v1971
        %v2001 = vmul.f32 %v1719, %v1973
        %v2002 = vmul.f32 %v1720, %v1975
        %v2003 = vmul.f32 %v1721, %v1977
        %v2004 = vmul.f32 %v1722, %v1979
        %v2005 = vmul.f32 %v1723, %v1981
        %v2006 = vmul.f32 %v1724, %v1983
        %v2007 = vmul.f32 %v1725, %v1985
        %v2008 = vmul.f32 %v1726, %v1987
        %v2009 = vmul.f32 %v1727, %v1989
        %v2010 = vmul.f32 %v1728, %v1991
        %v2011 = vmul.f32 %v1729, %v1993
        %v2012 = vmul.f32 %v1730, %v1995
        %v2013 = vmul.f32 %v1731, %v1997
        %v2014 = vlaneseq
        %v2015 = vshrl.u32 %v2014, 7
        %v2016 = vsub.s32 0, %v2015
        %v2017 = vrot.slane %v1945, %v2016
        %v2018 = vadd.f32 %v1998, %v2017
        %v2019 = vadd.f32 %v1999, %v2017
        %v2020 = vadd.f32 %v2000, %v2017
        %v2021 = vadd.f32 %v2001, %v2017
        %v2022 = vadd.f32 %v2002, %v2017
        %v2023 = vadd.f32 %v2003, %v2017
        %v2024 = vadd.f32 %v2004, %v2017
        %v2025 = vadd.f32 %v2005, %v2017
        %v2026 = vadd.f32 %v2006, %v2017
        %v2027 = vadd.f32 %v2007, %v2017
        %v2028 = vadd.f32 %v2008, %v2017
        %v2029 = vadd.f32 %v2009, %v2017
        %v2030 = vadd.f32 %v2010, %v2017
        %v2031 = vadd.f32 %v2011, %v2017
        %v2032 = vadd.f32 %v2012, %v2017
        %v2033 = vadd.f32 %v2013, %v2017
        %v2034 = vadd.f32 %v2018, %v1928
        %v2035 = vadd.f32 %v2019, %v1929
        %v2036 = vadd.f32 %v2020, %v1930
        %v2037 = vadd.f32 %v2021, %v1931
        %v2038 = vadd.f32 %v2022, %v1932
        %v2039 = vadd.f32 %v2023, %v1933
        %v2040 = vadd.f32 %v2024, %v1934
        %v2041 = vadd.f32 %v2025, %v1935
        %v2042 = vadd.f32 %v2026, %v1936
        %v2043 = vadd.f32 %v2027, %v1937
        %v2044 = vadd.f32 %v2028, %v1938
        %v2045 = vadd.f32 %v2029, %v1939
        %v2046 = vadd.f32 %v2030, %v1940
        %v2047 = vadd.f32 %v2031, %v1941
        %v2048 = vadd.f32 %v2032, %v1942
        %v2049 = vadd.f32 %v2033, %v1943
        %v2050 = vld [vmem:[%s4] sm:$0xff]
        %v2051 = vld [vmem:[%s4 + $0x8] sm:$0xff]
        %v2052 = vld [vmem:[%s4 + $0x10] sm:$0xff]
        %v2053 = vld [vmem:[%s4 + $0x18] sm:$0xff]
        %v2054 = vld [vmem:[%s4 + $0x20] sm:$0xff]
        %v2055 = vld [vmem:[%s4 + $0x28] sm:$0xff]
        %v2056 = vld [vmem:[%s4 + $0x30] sm:$0xff]
        %v2057 = vld [vmem:[%s4 + $0x38] sm:$0xff]
        %v2058 = vld [vmem:[%s4 + $0x40] sm:$0xff]
        %v2059 = vld [vmem:[%s4 + $0x48] sm:$0xff]
        %v2060 = vld [vmem:[%s4 + $0x50] sm:$0xff]
        %v2061 = vld [vmem:[%s4 + $0x58] sm:$0xff]
        %v2062 = vld [vmem:[%s4 + $0x60] sm:$0xff]
        %v2063 = vld [vmem:[%s4 + $0x68] sm:$0xff]
        %v2064 = vld [vmem:[%s4 + $0x70] sm:$0xff]
        %v2065 = vld [vmem:[%s4 + $0x78] sm:$0xff]
        %v2066 = vld [vmem:[%s5] sm:$0x1]
        %v2068 = vlaneseq
        %v2069 = vshrl.u32 %v2068, 7
        %v2070 = vsub.s32 0, %v2069
        %v2071 = vrot.slane %v2066, %v2070
        %2073 = vmatprep.subr.mxu0 0.0
        %2074 = vmatpush1.msra.mxu0 %v2065
        %2075 = vmatprep.subr.mxu0 0.0
        %2076 = vmatpush1.msra.mxu0 %v2064
        %2077 = vmatprep.subr.mxu0 0.0
        %2078 = vmatpush1.msra.mxu0 %v2063
        %2079 = vmatprep.subr.mxu0 0.0
        %2080 = vmatpush1.msra.mxu0 %v2062
        %2081 = vmatprep.subr.mxu0 0.0
        %2082 = vmatpush1.msra.mxu0 %v2061
        %2083 = vmatprep.subr.mxu0 0.0
        %2084 = vmatpush1.msra.mxu0 %v2060
        %2085 = vmatprep.subr.mxu0 0.0
        %2086 = vmatpush1.msra.mxu0 %v2059
        %2087 = vmatprep.subr.mxu0 0.0
        %2088 = vmatpush1.msra.mxu0 %v2058
        %2089 = vmatprep.subr.mxu0 0.0
        %2090 = vmatpush1.msra.mxu0 %v2057
        %2091 = vmatprep.subr.mxu0 0.0
        %2092 = vmatpush1.msra.mxu0 %v2056
        %2093 = vmatprep.subr.mxu0 0.0
        %2094 = vmatpush1.msra.mxu0 %v2055
        %2095 = vmatprep.subr.mxu0 0.0
        %2096 = vmatpush1.msra.mxu0 %v2054
        %2097 = vmatprep.subr.mxu0 0.0
        %2098 = vmatpush1.msra.mxu0 %v2053
        %2099 = vmatprep.subr.mxu0 0.0
        %2100 = vmatpush1.msra.mxu0 %v2052
        %2101 = vmatprep.subr.mxu0 0.0
        %2102 = vmatpush1.msra.mxu0 %v2051
        %2103 = vmatprep.subr.mxu0 0.0
        %2104 = vmatpush1.msra.mxu0 %v2050
        %2105 = vmatprep.subr.mxu0 0.0
        %2106 = vmatpush2.msra.mxu0 0.0
        %2107 = vmatprep.subr.mxu0 0.0
        %2108 = vmatpush2.msra.mxu0 0.0
        %2109 = vmatprep.subr.mxu0 0.0
        %2110 = vmatpush2.msra.mxu0 0.0
        %2111 = vmatprep.subr.mxu0 0.0
        %2112 = vmatpush2.msra.mxu0 0.0
        %2113 = vmatprep.subr.mxu0 0.0
        %2114 = vmatpush2.msra.mxu0 0.0
        %2115 = vmatprep.subr.mxu0 0.0
        %2116 = vmatpush2.msra.mxu0 0.0
        %2117 = vmatprep.subr.mxu0 0.0
        %2118 = vmatpush2.msra.mxu0 0.0
        %2119 = vmatprep.subr.mxu0 0.0
        %2120 = vmatpush2.msra.mxu0 0.0
        %2121 = vmatprep.subr.mxu0 0.0
        %2122 = vmatpush2.msra.mxu0 0.0
        %2123 = vmatprep.subr.mxu0 0.0
        %2124 = vmatpush2.msra.mxu0 0.0
        %2125 = vmatprep.subr.mxu0 0.0
        %2126 = vmatpush2.msra.mxu0 0.0
        %2127 = vmatprep.subr.mxu0 0.0
        %2128 = vmatpush2.msra.mxu0 0.0
        %2129 = vmatprep.subr.mxu0 0.0
        %2130 = vmatpush2.msra.mxu0 0.0
        %2131 = vmatprep.subr.mxu0 0.0
        %2132 = vmatpush2.msra.mxu0 0.0
        %2133 = vmatprep.subr.mxu0 0.0
        %2134 = vmatpush2.msra.mxu0 0.0
        %2135 = vmatprep.subr.mxu0 0.0
        %2136 = vmatpush2.msra.mxu0 0.0
        %2137 = vmatprep.mubr.f32.mxu0 0.0
        %2138 = vmatmul.mubr.f32.gmra.mxu0 %v2034
        %v2139 = vpop.f32.mrf.mxu0
        %v2140 = vadd.f32 %v2071, %v2139
        %v2141 = vpop.f32.mrf.mxu0
        %2142 = vmatprep.mubr.f32.mxu0 0.0
        %2143 = vmatmul.mubr.f32.gmra.mxu0 %v2035
        %v2144 = vpop.f32.mrf.mxu0
        %v2145 = vadd.f32 %v2071, %v2144
        %v2146 = vpop.f32.mrf.mxu0
        %2147 = vmatprep.mubr.f32.mxu0 0.0
        %2148 = vmatmul.mubr.f32.gmra.mxu0 %v2036
        %v2149 = vpop.f32.mrf.mxu0
        %v2150 = vadd.f32 %v2071, %v2149
        %v2151 = vpop.f32.mrf.mxu0
        %2152 = vmatprep.mubr.f32.mxu0 0.0
        %2153 = vmatmul.mubr.f32.gmra.mxu0 %v2037
        %v2154 = vpop.f32.mrf.mxu0
        %v2155 = vadd.f32 %v2071, %v2154
        %v2156 = vpop.f32.mrf.mxu0
        %2157 = vmatprep.mubr.f32.mxu0 0.0
        %2158 = vmatmul.mubr.f32.gmra.mxu0 %v2038
        %v2159 = vpop.f32.mrf.mxu0
        %v2160 = vadd.f32 %v2071, %v2159
        %v2161 = vpop.f32.mrf.mxu0
        %2162 = vmatprep.mubr.f32.mxu0 0.0
        %2163 = vmatmul.mubr.f32.gmra.mxu0 %v2039
        %v2164 = vpop.f32.mrf.mxu0
        %v2165 = vadd.f32 %v2071, %v2164
        %v2166 = vpop.f32.mrf.mxu0
        %2167 = vmatprep.mubr.f32.mxu0 0.0
        %2168 = vmatmul.mubr.f32.gmra.mxu0 %v2040
        %v2169 = vpop.f32.mrf.mxu0
        %v2170 = vadd.f32 %v2071, %v2169
        %v2171 = vpop.f32.mrf.mxu0
        %2172 = vmatprep.mubr.f32.mxu0 0.0
        %2173 = vmatmul.mubr.f32.gmra.mxu0 %v2041
        %v2174 = vpop.f32.mrf.mxu0
        %v2175 = vadd.f32 %v2071, %v2174
        %v2176 = vpop.f32.mrf.mxu0
        %2177 = vmatprep.mubr.f32.mxu0 0.0
        %2178 = vmatmul.mubr.f32.gmra.mxu0 %v2042
        %v2179 = vpop.f32.mrf.mxu0
        %v2180 = vadd.f32 %v2071, %v2179
        %v2181 = vpop.f32.mrf.mxu0
        %2182 = vmatprep.mubr.f32.mxu0 0.0
        %2183 = vmatmul.mubr.f32.gmra.mxu0 %v2043
        %v2184 = vpop.f32.mrf.mxu0
        %v2185 = vadd.f32 %v2071, %v2184
        %v2186 = vpop.f32.mrf.mxu0
        %2187 = vmatprep.mubr.f32.mxu0 0.0
        %2188 = vmatmul.mubr.f32.gmra.mxu0 %v2044
        %v2189 = vpop.f32.mrf.mxu0
        %v2190 = vadd.f32 %v2071, %v2189
        %v2191 = vpop.f32.mrf.mxu0
        %2192 = vmatprep.mubr.f32.mxu0 0.0
        %2193 = vmatmul.mubr.f32.gmra.mxu0 %v2045
        %v2194 = vpop.f32.mrf.mxu0
        %v2195 = vadd.f32 %v2071, %v2194
        %v2196 = vpop.f32.mrf.mxu0
        %2197 = vmatprep.mubr.f32.mxu0 0.0
        %2198 = vmatmul.mubr.f32.gmra.mxu0 %v2046
        %v2199 = vpop.f32.mrf.mxu0
        %v2200 = vadd.f32 %v2071, %v2199
        %v2201 = vpop.f32.mrf.mxu0
        %2202 = vmatprep.mubr.f32.mxu0 0.0
        %2203 = vmatmul.mubr.f32.gmra.mxu0 %v2047
        %v2204 = vpop.f32.mrf.mxu0
        %v2205 = vadd.f32 %v2071, %v2204
        %v2206 = vpop.f32.mrf.mxu0
        %2207 = vmatprep.mubr.f32.mxu0 0.0
        %2208 = vmatmul.mubr.f32.gmra.mxu0 %v2048
        %v2209 = vpop.f32.mrf.mxu0
        %v2210 = vadd.f32 %v2071, %v2209
        %v2211 = vpop.f32.mrf.mxu0
        %2212 = vmatprep.mubr.f32.mxu0 0.0
        %2213 = vmatmul.mubr.f32.gmra.mxu0 %v2049
        %v2214 = vpop.f32.mrf.mxu0
        %v2215 = vadd.f32 %v2071, %v2214
        %v2216 = vpop.f32.mrf.mxu0
        %2217 = vdwg.mxu0
        %v2218 = vmax.f32 %v2140, 0.0
        %v2219 = vmax.f32 %v2145, 0.0
        %v2220 = vmax.f32 %v2150, 0.0
        %v2221 = vmax.f32 %v2155, 0.0
        %v2222 = vmax.f32 %v2160, 0.0
        %v2223 = vmax.f32 %v2165, 0.0
        %v2224 = vmax.f32 %v2170, 0.0
        %v2225 = vmax.f32 %v2175, 0.0
        %v2226 = vmax.f32 %v2180, 0.0
        %v2227 = vmax.f32 %v2185, 0.0
        %v2228 = vmax.f32 %v2190, 0.0
        %v2229 = vmax.f32 %v2195, 0.0
        %v2230 = vmax.f32 %v2200, 0.0
        %v2231 = vmax.f32 %v2205, 0.0
        %v2232 = vmax.f32 %v2210, 0.0
        %v2233 = vmax.f32 %v2215, 0.0
        %v2234 = vld [vmem:[%s6] sm:$0x1]
        %2235 = vmatprep.subr.mxu0 0.0
        %2236 = vmatpush1.xpose.msra.mxu0 %v2233
        %2237 = vmatprep.subr.mxu0 0.0
        %2238 = vmatpush1.xpose.msra.mxu0 %v2232
        %2239 = vmatprep.subr.mxu0 0.0
        %2240 = vmatpush1.xpose.msra.mxu0 %v2231
        %2241 = vmatprep.subr.mxu0 0.0
        %2242 = vmatpush1.xpose.msra.mxu0 %v2230
        %2243 = vmatprep.subr.mxu0 0.0
        %2244 = vmatpush1.xpose.msra.mxu0 %v2229
        %2245 = vmatprep.subr.mxu0 0.0
        %2246 = vmatpush1.xpose.msra.mxu0 %v2228
        %2247 = vmatprep.subr.mxu0 0.0
        %2248 = vmatpush1.xpose.msra.mxu0 %v2227
        %2249 = vmatprep.subr.mxu0 0.0
        %2250 = vmatpush1.xpose.msra.mxu0 %v2226
        %2251 = vmatprep.subr.mxu0 0.0
        %2252 = vmatpush1.xpose.msra.mxu0 %v2225
        %2253 = vmatprep.subr.mxu0 0.0
        %2254 = vmatpush1.xpose.msra.mxu0 %v2224
        %2255 = vmatprep.subr.mxu0 0.0
        %2256 = vmatpush1.xpose.msra.mxu0 %v2223
        %2257 = vmatprep.subr.mxu0 0.0
        %2258 = vmatpush1.xpose.msra.mxu0 %v2222
        %2259 = vmatprep.subr.mxu0 0.0
        %2260 = vmatpush1.xpose.msra.mxu0 %v2221
        %2261 = vmatprep.subr.mxu0 0.0
        %2262 = vmatpush1.xpose.msra.mxu0 %v2220
        %2263 = vmatprep.subr.mxu0 0.0
        %2264 = vmatpush1.xpose.msra.mxu0 %v2219
        %2265 = vmatprep.subr.mxu0 0.0
        %2266 = vmatpush1.xpose.msra.mxu0 %v2218
        %2267 = vmatprep.subr.mxu0 0.0
        %2268 = vmatpush2.xpose.msra.mxu0 0.0
        %2269 = vmatprep.subr.mxu0 0.0
        %2270 = vmatpush2.xpose.msra.mxu0 0.0
        %2271 = vmatprep.subr.mxu0 0.0
        %2272 = vmatpush2.xpose.msra.mxu0 0.0
        %2273 = vmatprep.subr.mxu0 0.0
        %2274 = vmatpush2.xpose.msra.mxu0 0.0
        %2275 = vmatprep.subr.mxu0 0.0
        %2276 = vmatpush2.xpose.msra.mxu0 0.0
        %2277 = vmatprep.subr.mxu0 0.0
        %2278 = vmatpush2.xpose.msra.mxu0 0.0
        %2279 = vmatprep.subr.mxu0 0.0
        %2280 = vmatpush2.xpose.msra.mxu0 0.0
        %2281 = vmatprep.subr.mxu0 0.0
        %2282 = vmatpush2.xpose.msra.mxu0 0.0
        %2283 = vmatprep.subr.mxu0 0.0
        %2284 = vmatpush2.xpose.msra.mxu0 0.0
        %2285 = vmatprep.subr.mxu0 0.0
        %2286 = vmatpush2.xpose.msra.mxu0 0.0
        %2287 = vmatprep.subr.mxu0 0.0
        %2288 = vmatpush2.xpose.msra.mxu0 0.0
        %2289 = vmatprep.subr.mxu0 0.0
        %2290 = vmatpush2.xpose.msra.mxu0 0.0
        %2291 = vmatprep.subr.mxu0 0.0
        %2292 = vmatpush2.xpose.msra.mxu0 0.0
        %2293 = vmatprep.subr.mxu0 0.0
        %2294 = vmatpush2.xpose.msra.mxu0 0.0
        %2295 = vmatprep.subr.mxu0 0.0
        %2296 = vmatpush2.xpose.msra.mxu0 0.0
        %2297 = vmatprep.subr.mxu0 0.0
        %2298 = vmatpush2.xpose.msra.mxu0 0.0
        %2299 = vmatprep.mubr.f32.mxu0 0.0
        %2300 = vmatmul.mubr.f32.gmra.mxu0 %v2234
        %v2301 = vpop.f32.mrf.mxu0
        %v2302 = vadd.f32 0.0, %v2301
        %v2303 = vpop.f32.mrf.mxu0
        %2304 = vdwg.mxu0
        %2305 = vst [vmem:[%s271] sm:$0x1] %v2302
        %s2306 = sand.u32 %s181, 1
        %s2307 = scalar_lea.sflag [#allocation4], %s2306
        %s2308 = sand.u32 %s181, 1
        %s2309 = scalar_lea.vmem [#allocation3], %s2308
        // Predicated region
        $region49: #{tpu_custom_call.1} parent=47 // pred_check
          %p2310 = pneg %p191
        $region50: #{tpu_custom_call.1} parent=47 // pred_check_branch
          %2312 = sbr.rel (%p2310) target = $region52
        $region51: #{tpu_custom_call.1} parent=47 // pred_region
          %s2314 = ssub.s32 16, 16
          %2315 = vsyncadd %s2307, %s2314
          %s2316 = smul.addr %s21, 16
          %s2317 = scalar_lea.hbm %s7, %s2316
          %s2319 = sshll.u32 %s2309, 4
          %s2320 = int_to_ptr.vmem [resolvable:$true] %s2319
          %2322 = dma.vmem_to_hbm [thread:$0]  %s2320, 16, %s2317, %s2307
        $region52: #{tpu_custom_call.1} parent=47 // pred_fallthru
          _
      $region48: #{tpu_custom_call.1} parent=5 // pred_fallthru
        _
      %p2323 = scmp.le.s32.totalorder 2, %s16
      // Predicated region
      $region53: #{tpu_custom_call.1} parent=5 // pred_check
        %p2324 = pneg %p2323
      $region54: #{tpu_custom_call.1} parent=5 // pred_check_branch
        %2326 = sbr.rel (%p2324) target = $region56
      $region55: #{tpu_custom_call.1} parent=5 // pred_region
        %s2327 = ssub.s32 %s16, 2
        // Predicated region
        $region57: #{tpu_custom_call.1} parent=55 // pred_check
          %p2328 = pneg %p197
        $region58: #{tpu_custom_call.1} parent=55 // pred_check_branch
          %2330 = sbr.rel (%p2328) target = $region60
        $region59: #{tpu_custom_call.1} parent=55 // pred_region
          %s2331 = sand.u32 %s182, 1
          %s2332 = scalar_lea.sflag [#allocation4], %s2331
          %s2333 = sand.u32 %s182, 1
          %s2334 = scalar_lea.vmem [#allocation3], %s2333
          %2335 = dma.done %s2332, 16
        $region60: #{tpu_custom_call.1} parent=55 // pred_fallthru
          _
      $region56: #{tpu_custom_call.1} parent=5 // pred_fallthru
        _
    $region6: #{tpu_custom_call.1} parent=1 // loop_footer
      %s20 = sadd.s32 1, %s16
    $region7: #{tpu_custom_call.1} parent=1 // loop_footer_branch
      %15 = sbr.rel target = $region3
    $region8: #{tpu_custom_call.1} parent=1 // loop_exit
      _
    %2336 = vsyncpa [#allocation4], 1
    %s2337 = scalar_lea.sflag [#allocation4], 1
    %2338 = vsyncpa %s2337, 1

</llo_original>
